<compile_context>
chip_gen: v7x
topology: tpu7x:2x2x1
jax: 0.10.0
libtpu: 0.0.40
codegen_flags: <defaults>
</compile_context>

<pallas_src>
import functools

import jax
import jax.numpy as jnp
from jax.experimental import pallas as pl
from jax.experimental.pallas import tpu as pltpu


# ----------------------------------------------------------------------------
# helpers
# ----------------------------------------------------------------------------
def _silu(v):
    # DimeNet++ uses swish/SiLU activation.
    return v * jax.nn.sigmoid(v)


def _mm(a, b):
    # bf16 operands on the MXU, f32 accumulation.
    return jnp.dot(a.astype(jnp.bfloat16), b.astype(jnp.bfloat16),
                   preferred_element_type=jnp.float32)


_VMEM_LIMIT = 40 * 1024 * 1024  # resident-set ceiling sized for v7x (64 MiB/TC)


# ----------------------------------------------------------------------------
# Kernel 1: per-edge compute (grid over E tiles, 'parallel')
#   x_kj      = act(lin_kj(x)) * (rbf @ W_rbf_folded)
#   x_kj_down = act(lin_down(x_kj))                     -> [tE, I] bf16
# ----------------------------------------------------------------------------
def edge_kernel(x_ref, rbf_ref, w_kj_ref, b_kj_ref, w_rbf_ref, w_down_ref,
                xkj_down_ref):
    x = x_ref[...]
    x_kj = _silu(_mm(x, w_kj_ref[...]) + b_kj_ref[...])
    rbf_emb = _mm(rbf_ref[...], w_rbf_ref[...])          # folded lin_rbf1∘lin_rbf2
    x_kj = x_kj * rbf_emb
    # TODO(synk): output lane width I < 128 -> masked stores; an [E//8, 8*I]
    # lane-dense packing of this slab would hit the unmasked-store fast path.
    xkj_down_ref[...] = _silu(_mm(x_kj, w_down_ref[...])).astype(xkj_down_ref.dtype)


# ----------------------------------------------------------------------------
# Kernel 2: per-triplet product (grid over T tiles, 'parallel')
#   prod = x_kj_down[idx_kj] * (sbf @ W_sbf_folded)      -> [tT, I] bf16
#   (the sbf projection is done exactly once here, not once per E tile)
# ----------------------------------------------------------------------------
def triplet_kernel(sbf_ref, gath_ref, w_sbf_ref, prod_ref):
    sbf_emb = _mm(sbf_ref[...], w_sbf_ref[...])           # [tT, I] f32
    prod = gath_ref[...].astype(jnp.float32) * sbf_emb
    prod_ref[...] = prod.astype(prod_ref.dtype)


# ----------------------------------------------------------------------------
# Kernel 3: tiled scatter-sum + fused post stage (grid = (E tiles, T tiles))
#   acc[e]  += sum_t [idx_ji[t] == e] * prod[t]     (one-hot on MXU, P3 accum)
#   at the last T tile:  h = act(lin_up(acc)) + act(lin_ji(x))
#                        h = residual_before(h); h = act(lin(h)) + x
#                        h = residual_after(h)   -> out [tE, H]
# ----------------------------------------------------------------------------
def scatter_post_kernel(prod_ref, idx_ji_ref, x_ref,
                        w_ji_ref, b_ji_ref, w_up_ref,
                        wb1_ref, bb1_ref, wb2_ref, bb2_ref,
                        w_lin_ref, b_lin_ref,
                        wa1_ref, ba1_ref, wa2_ref, ba2_ref,
                        out_ref, acc_ref, *, num_before, num_after):
    ei = pl.program_id(0)
    ti = pl.program_id(1)
    tile_e = acc_ref.shape[0]
    tile_t = prod_ref.shape[0]

    @pl.when(ti == 0)
    def _():
        acc_ref[...] = jnp.zeros_like(acc_ref)

    # Transposed scatter one-hot, built directly in bf16 (no f32 intermediate):
    # oh[e_local, t] = (idx_ji[t] == e_global); idx on lanes, iota on sublanes.
    e_iota = jax.lax.broadcasted_iota(jnp.int32, (tile_e, tile_t), 0) + ei * tile_e
    oh = (idx_ji_ref[...] == e_iota).astype(jnp.bfloat16)
    acc_ref[...] += jnp.dot(oh, prod_ref[...], preferred_element_type=jnp.float32)

    # Fused post stage on the VMEM-resident accumulator: no HBM round trip of
    # the scattered [E, I] tensor and no separate third kernel launch.
    @pl.when(ti == pl.num_programs(1) - 1)
    def _():
        x = x_ref[...]
        x_ji = _silu(_mm(x, w_ji_ref[...]) + b_ji_ref[...])
        x_kj = _silu(_mm(acc_ref[...], w_up_ref[...]))
        h = x_ji + x_kj
        for i in range(num_before):  # static unroll
            t = _silu(_mm(h, wb1_ref[i]) + bb1_ref[i])
            h = h + _silu(_mm(t, wb2_ref[i]) + bb2_ref[i])
        h = _silu(_mm(h, w_lin_ref[...]) + b_lin_ref[...]) + x
        for i in range(num_after):  # static unroll
            t = _silu(_mm(h, wa1_ref[i]) + ba1_ref[i])
            h = h + _silu(_mm(t, wa2_ref[i]) + ba2_ref[i])
        out_ref[...] = h


# ----------------------------------------------------------------------------
# Wrapper
# ----------------------------------------------------------------------------
def interaction_pp_block(x, rbf, sbf, idx_kj, idx_ji, params,
                         num_before_skip, num_after_skip,
                         *, tile_e=512, tile_t=512):
    E, H = x.shape
    T, NSR = sbf.shape
    NR = rbf.shape[1]
    I = params["w_down"].shape[1]

    tE = min(tile_e, E)
    # Keep n_e >= 2 so both v7x TensorCores get work on the 'parallel' E axis.
    if E // tE < 2 and tE % 16 == 0:
        tE //= 2
    tT = min(tile_t, T)
    assert E % tE == 0 and T % tT == 0, "E/T must divide the chosen tile sizes"
    n_e = E // tE
    n_t = T // tT

    f32, bf16 = jnp.float32, jnp.bfloat16

    # Fold the bias-free basis double-linears (algebraically identical).
    w_rbf = (params["w_rbf1"] @ params["w_rbf2"]).astype(bf16)   # [NR,  H]
    w_sbf = (params["w_sbf1"] @ params["w_sbf2"]).astype(bf16)   # [NSR, I]

    wb = lambda k: params[k].astype(bf16)      # bf16 weights for the MXU
    pin2 = lambda *_: (0, 0)                   # weight pinned across the grid
    pin3 = lambda *_: (0, 0, 0)

    # --- kernel 1: edge-level down-projected messages ------------------------
    xkj_down = pl.pallas_call(
        edge_kernel,
        grid=(n_e,),
        in_specs=[
            pl.BlockSpec((tE, H), lambda i: (i, 0)),
            pl.BlockSpec((tE, NR), lambda i: (i, 0)),
            pl.BlockSpec(params["w_kj"].shape, pin2),
            pl.BlockSpec(params["b_kj"].shape, pin2),
            pl.BlockSpec(w_rbf.shape, pin2),
            pl.BlockSpec(params["w_down"].shape, pin2),
        ],
        out_specs=pl.BlockSpec((tE, I), lambda i: (i, 0)),
        out_shape=jax.ShapeDtypeStruct((E, I), bf16),
        compiler_params=pltpu.CompilerParams(
            dimension_semantics=("parallel",),
            vmem_limit_bytes=_VMEM_LIMIT),
    )(x, rbf, wb("w_kj"), params["b_kj"], w_rbf, wb("w_down"))

    # --- row gather for the triplets -----------------------------------------
    # TODO(synk): an in-kernel gather against a VMEM-pinned xkj_down table would
    # remove this [T, I] HBM round trip; kept wrapper-side (XLA gather) for
    # robust lowering.
    idx_kj = idx_kj.astype(jnp.int32)
    idx_ji_row = idx_ji.astype(jnp.int32).reshape(1, T)   # lane-major indices
    xkj_gath = jnp.take(xkj_down, idx_kj, axis=0)          # [T, I] bf16

    # --- kernel 2: per-triplet product (sbf work hoisted out of the E loop) --
    prod = pl.pallas_call(
        triplet_kernel,
        grid=(n_t,),
        in_specs=[
            pl.BlockSpec((tT, NSR), lambda i: (i, 0)),
            pl.BlockSpec((tT, I), lambda i: (i, 0)),
            pl.BlockSpec(w_sbf.shape, pin2),
        ],
        out_specs=pl.BlockSpec((tT, I), lambda i: (i, 0)),
        out_shape=jax.ShapeDtypeStruct((T, I), bf16),
        compiler_params=pltpu.CompilerParams(
            dimension_semantics=("parallel",),
            vmem_limit_bytes=_VMEM_LIMIT),
    )(sbf, xkj_gath, w_sbf)

    # --- kernel 3: tiled scatter-sum + fused post stage ----------------------
    # TODO(synk): for DimeNet-scale graphs, replace the dense one-hot scatter
    # with a sorted-segment scatter (PrefetchScalarGridSpec per-tile offsets).
    h = pl.pallas_call(
        functools.partial(scatter_post_kernel,
                          num_before=num_before_skip,
                          num_after=num_after_skip),
        grid=(n_e, n_t),
        in_specs=[
            pl.BlockSpec((tT, I), lambda ei, ti: (ti, 0)),   # prod (streamed)
            pl.BlockSpec((1, tT), lambda ei, ti: (0, ti)),   # idx_ji (lanes)
            pl.BlockSpec((tE, H), lambda ei, ti: (ei, 0)),   # x (resident per ei)
            pl.BlockSpec(params["w_ji"].shape, pin2),
            pl.BlockSpec(params["b_ji"].shape, pin2),
            pl.BlockSpec(params["w_up"].shape, pin2),
            pl.BlockSpec(params["wb1"].shape, pin3),
            pl.BlockSpec(params["bb1"].shape, pin3),
            pl.BlockSpec(params["wb2"].shape, pin3),
            pl.BlockSpec(params["bb2"].shape, pin3),
            pl.BlockSpec(params["w_lin"].shape, pin2),
            pl.BlockSpec(params["b_lin"].shape, pin2),
            pl.BlockSpec(params["wa1"].shape, pin3),
            pl.BlockSpec(params["ba1"].shape, pin3),
            pl.BlockSpec(params["wa2"].shape, pin3),
            pl.BlockSpec(params["ba2"].shape, pin3),
        ],
        out_specs=pl.BlockSpec((tE, H), lambda ei, ti: (ei, 0)),
        out_shape=jax.ShapeDtypeStruct((E, H), f32),
        scratch_shapes=[pltpu.VMEM((tE, I), f32)],
        compiler_params=pltpu.CompilerParams(
            dimension_semantics=("parallel", "arbitrary"),
            vmem_limit_bytes=_VMEM_LIMIT),
    )(prod, idx_ji_row, x,
      wb("w_ji"), params["b_ji"], wb("w_up"),
      wb("wb1"), params["bb1"], wb("wb2"), params["bb2"],
      wb("w_lin"), params["b_lin"],
      wb("wa1"), params["ba1"], wb("wa2"), params["ba2"])
    return h


# ----------------------------------------------------------------------------
# pure-JAX f32 reference (unfolded weights, for correctness check)
# ----------------------------------------------------------------------------
def reference(x, rbf, sbf, idx_kj, idx_ji, p, nb, na):
    act = _silu
    x_ji = act(x @ p["w_ji"] + p["b_ji"])
    x_kj = act(x @ p["w_kj"] + p["b_kj"])
    rbf_e = (rbf @ p["w_rbf1"]) @ p["w_rbf2"]
    x_kj = x_kj * rbf_e
    x_kj = act(x_kj @ p["w_down"])
    sbf_e = (sbf @ p["w_sbf1"]) @ p["w_sbf2"]
    x_kj = x_kj[idx_kj] * sbf_e
    x_kj = jax.ops.segment_sum(x_kj, idx_ji, num_segments=x.shape[0])
    x_kj = act(x_kj @ p["w_up"])
    h = x_ji + x_kj
    for i in range(nb):
        h = h + act(act(h @ p["wb1"][i] + p["bb1"][i]) @ p["wb2"][i] + p["bb2"][i])
    h = act(h @ p["w_lin"] + p["b_lin"]) + x
    for i in range(na):
        h = h + act(act(h @ p["wa1"][i] + p["ba1"][i]) @ p["wa2"][i] + p["ba2"][i])
    return h


# ----------------------------------------------------------------------------
# main
# ----------------------------------------------------------------------------
if __name__ == "__main__":
    # module hyperparameters (small but consistent with DimeNet++)
    H = 64            # hidden_channels
    I = 32            # int_emb_size
    B = 8             # basis_emb_size
    NS, NR = 3, 4     # num_spherical, num_radial
    NB, NA = 1, 2     # num_before_skip, num_after_skip
    E, T = 512, 1024  # edges, triplets (exercises the (E, T) tiling: n_e=n_t=2)

    key = jax.random.PRNGKey(0)
    ks = iter(jax.random.split(key, 64))

    def glorot(shape):
        fan_in, fan_out = shape[-2], shape[-1]
        lim = (6.0 / (fan_in + fan_out)) ** 0.5
        return jax.random.uniform(next(ks), shape, jnp.float32, -lim, lim)

    # Deterministic synthetic parameters (glorot-uniform-like; not a checkpoint)
    # TODO(synk): glorot_orthogonal init not reproduced exactly (synthetic weights).
    params = {
        "w_ji": glorot((H, H)),   "b_ji": jnp.zeros((1, H), jnp.float32),
        "w_kj": glorot((H, H)),   "b_kj": jnp.zeros((1, H), jnp.float32),
        "w_rbf1": glorot((NR, B)), "w_rbf2": glorot((B, H)),
        "w_sbf1": glorot((NS * NR, B)), "w_sbf2": glorot((B, I)),
        "w_down": glorot((H, I)), "w_up": glorot((I, H)),
        "wb1": glorot((NB, H, H)), "bb1": jnp.zeros((NB, 1, H), jnp.float32),
        "wb2": glorot((NB, H, H)), "bb2": jnp.zeros((NB, 1, H), jnp.float32),
        "w_lin": glorot((H, H)),  "b_lin": jnp.zeros((1, H), jnp.float32),
        "wa1": glorot((NA, H, H)), "ba1": jnp.zeros((NA, 1, H), jnp.float32),
        "wa2": glorot((NA, H, H)), "ba2": jnp.zeros((NA, 1, H), jnp.float32),
    }

    # inputs
    x = jax.random.normal(next(ks), (E, H), jnp.float32)
    rbf = jax.random.normal(next(ks), (E, NR), jnp.float32)
    sbf = jax.random.normal(next(ks), (T, NS * NR), jnp.float32)
    idx_kj = jax.random.randint(next(ks), (T,), 0, E, jnp.int32)
    idx_ji = jax.random.randint(next(ks), (T,), 0, E, jnp.int32)

    out = interaction_pp_block(x, rbf, sbf, idx_kj, idx_ji, params, NB, NA)
    out = jax.block_until_ready(out)

    ref = reference(x, rbf, sbf, idx_kj, idx_ji, params, NB, NA)
    assert out.shape == (E, H)
    # tolerance covers bf16 matmul operands (f32 accumulation) + folded basis weights
    assert jnp.allclose(out, ref, rtol=5e-2, atol=5e-2), "mismatch vs reference"

    print("KERNEL_OK")
</pallas_src>

<mosaic_0001>
module attributes {stable_mosaic.version = 11 : i64} {
  func.func @edge_kernel(%arg0: i32, %arg1: memref<256x64xf32, #tpu.memory_space<vmem>>, %arg2: memref<256x4xf32, #tpu.memory_space<vmem>>, %arg3: memref<64x64xbf16, #tpu.memory_space<vmem>>, %arg4: memref<1x64xf32, #tpu.memory_space<vmem>>, %arg5: memref<4x64xbf16, #tpu.memory_space<vmem>>, %arg6: memref<64x32xbf16, #tpu.memory_space<vmem>>, %arg7: memref<256x32xbf16, #tpu.memory_space<vmem>>) attributes {dimension_semantics = [#tpu.dimension_semantics<parallel>], iteration_bounds = array<i64: 2>, scalar_prefetch = 0 : i64, scratch_operands = 0 : i64, tpu.core_type = #tpu.core_type<tc>, window_params = [{transform_indices = @transform_0, window_bounds = array<i64: 256, 64>}, {transform_indices = @transform_1, window_bounds = array<i64: 256, 4>}, {pipeline_mode = #tpu.pipeline_mode<synchronous>, transform_indices = @transform_2, window_bounds = array<i64: 64, 64>}, {pipeline_mode = #tpu.pipeline_mode<synchronous>, transform_indices = @transform_3, window_bounds = array<i64: 1, 64>}, {pipeline_mode = #tpu.pipeline_mode<synchronous>, transform_indices = @transform_4, window_bounds = array<i64: 4, 64>}, {pipeline_mode = #tpu.pipeline_mode<synchronous>, transform_indices = @transform_5, window_bounds = array<i64: 64, 32>}, {transform_indices = @transform_6, window_bounds = array<i64: 256, 32>}]} {
    %c0 = arith.constant 0 : index
    %c0_0 = arith.constant 0 : index
    %0 = vector.load %arg1[%c0, %c0_0] : memref<256x64xf32, #tpu.memory_space<vmem>>, vector<256x64xf32>
    %c0_1 = arith.constant 0 : index
    %c0_2 = arith.constant 0 : index
    %1 = vector.load %arg3[%c0_1, %c0_2] : memref<64x64xbf16, #tpu.memory_space<vmem>>, vector<64x64xbf16>
    %2 = arith.truncf %0 : vector<256x64xf32> to vector<256x64xbf16>
    %cst = arith.constant dense<0.000000e+00> : vector<256x64xf32>
    %3 = tpu.matmul %2, %1, %cst {dimension_numbers = #tpu.dot_dimension_numbers<[1], [0], [0], [1], [0, 0, 1, 1], [], []>} : vector<256x64xbf16>, vector<64x64xbf16>, vector<256x64xf32> -> vector<256x64xf32>
    %c0_3 = arith.constant 0 : index
    %c0_4 = arith.constant 0 : index
    %4 = vector.load %arg4[%c0_3, %c0_4] : memref<1x64xf32, #tpu.memory_space<vmem>>, vector<1x64xf32>
    %5 = vector.broadcast %4 : vector<1x64xf32> to vector<256x64xf32>
    %6 = arith.addf %3, %5 : vector<256x64xf32>
    %7 = arith.negf %6 : vector<256x64xf32>
    %8 = math.exp %7 : vector<256x64xf32>
    %cst_5 = arith.constant 1.000000e+00 : f32
    %9 = vector.broadcast %cst_5 : f32 to vector<256x64xf32>
    %10 = arith.addf %9, %8 : vector<256x64xf32>
    %11 = arith.divf %9, %10 : vector<256x64xf32>
    %12 = arith.mulf %6, %11 : vector<256x64xf32>
    %c0_6 = arith.constant 0 : index
    %c0_7 = arith.constant 0 : index
    %13 = vector.load %arg2[%c0_6, %c0_7] : memref<256x4xf32, #tpu.memory_space<vmem>>, vector<256x4xf32>
    %c0_8 = arith.constant 0 : index
    %c0_9 = arith.constant 0 : index
    %14 = vector.load %arg5[%c0_8, %c0_9] : memref<4x64xbf16, #tpu.memory_space<vmem>>, vector<4x64xbf16>
    %15 = arith.truncf %13 : vector<256x4xf32> to vector<256x4xbf16>
    %cst_10 = arith.constant dense<0.000000e+00> : vector<256x64xf32>
    %16 = tpu.matmul %15, %14, %cst_10 {dimension_numbers = #tpu.dot_dimension_numbers<[1], [0], [0], [1], [0, 0, 1, 1], [], []>} : vector<256x4xbf16>, vector<4x64xbf16>, vector<256x64xf32> -> vector<256x64xf32>
    %17 = arith.mulf %12, %16 : vector<256x64xf32>
    %c0_11 = arith.constant 0 : index
    %c0_12 = arith.constant 0 : index
    %18 = vector.load %arg6[%c0_11, %c0_12] : memref<64x32xbf16, #tpu.memory_space<vmem>>, vector<64x32xbf16>
    %19 = arith.truncf %17 : vector<256x64xf32> to vector<256x64xbf16>
    %cst_13 = arith.constant dense<0.000000e+00> : vector<256x32xf32>
    %20 = tpu.matmul %19, %18, %cst_13 {dimension_numbers = #tpu.dot_dimension_numbers<[1], [0], [0], [1], [0, 0, 1, 1], [], []>} : vector<256x64xbf16>, vector<64x32xbf16>, vector<256x32xf32> -> vector<256x32xf32>
    %21 = arith.negf %20 : vector<256x32xf32>
    %22 = math.exp %21 : vector<256x32xf32>
    %cst_14 = arith.constant 1.000000e+00 : f32
    %23 = vector.broadcast %cst_14 : f32 to vector<256x32xf32>
    %24 = arith.addf %23, %22 : vector<256x32xf32>
    %25 = arith.divf %23, %24 : vector<256x32xf32>
    %26 = arith.mulf %20, %25 : vector<256x32xf32>
    %27 = arith.truncf %26 : vector<256x32xf32> to vector<256x32xbf16>
    %c0_15 = arith.constant 0 : index
    %c0_16 = arith.constant 0 : index
    %28 = vector.load %arg7[%c0_15, %c0_16] : memref<256x32xbf16, #tpu.memory_space<vmem>>, vector<256x32xbf16>
    tpu.vector_store %arg7[%c0_15, %c0_16], %27 {strides = array<i32>} : memref<256x32xbf16, #tpu.memory_space<vmem>>, vector<256x32xbf16>,
    return
  }
  func.func @transform_0(%arg0: i32) -> (i32, i32) {
    %c0_i32 = arith.constant 0 : i32
    %c0_i32_0 = arith.constant 0 : i32
    return %arg0, %c0_i32 : i32, i32
  }
  func.func @transform_1(%arg0: i32) -> (i32, i32) {
    %c0_i32 = arith.constant 0 : i32
    %c0_i32_0 = arith.constant 0 : i32
    return %arg0, %c0_i32 : i32, i32
  }
  func.func @transform_2(%arg0: i32) -> (i32, i32) {
    %c0_i32 = arith.constant 0 : i32
    %c0_i32_0 = arith.constant 0 : i32
    %c0_i32_1 = arith.constant 0 : i32
    return %c0_i32, %c0_i32_0 : i32, i32
  }
  func.func @transform_3(%arg0: i32) -> (i32, i32) {
    %c0_i32 = arith.constant 0 : i32
    %c0_i32_0 = arith.constant 0 : i32
    %c0_i32_1 = arith.constant 0 : i32
    return %c0_i32, %c0_i32_0 : i32, i32
  }
  func.func @transform_4(%arg0: i32) -> (i32, i32) {
    %c0_i32 = arith.constant 0 : i32
    %c0_i32_0 = arith.constant 0 : i32
    %c0_i32_1 = arith.constant 0 : i32
    return %c0_i32, %c0_i32_0 : i32, i32
  }
  func.func @transform_5(%arg0: i32) -> (i32, i32) {
    %c0_i32 = arith.constant 0 : i32
    %c0_i32_0 = arith.constant 0 : i32
    %c0_i32_1 = arith.constant 0 : i32
    return %c0_i32, %c0_i32_0 : i32, i32
  }
  func.func @transform_6(%arg0: i32) -> (i32, i32) {
    %c0_i32 = arith.constant 0 : i32
    %c0_i32_0 = arith.constant 0 : i32
    return %arg0, %c0_i32 : i32, i32
  }
}

</mosaic_0001>

<llo_original>
// kernel: tpu_custom_call.1
$region0: #{tpu_custom_call.1}
  #allocation0 [shape = 'u32[]', space=smem, size = 0x4, offset = 0x4, fixed_abs, tag = 'smem constant byte address 0x4 - core index']
  #allocation1 [shape = 'u32[144,128]{1,0:T(1,128)}', space=vmem, size = 0x12000, scoped, tag = 'internal scratch']
  %s0 = inlined_call_operand.vmem [shape: f32[512,64], index: 0, kind: input, shape index: {}]
  %s1 = inlined_call_operand.vmem [shape: f32[512,4], index: 1, kind: input, shape index: {}]
  %s2 = inlined_call_operand.vmem [shape: bf16[64,64], index: 2, kind: input, shape index: {}]
  %s3 = inlined_call_operand.vmem [shape: f32[1,64], index: 3, kind: input, shape index: {}]
  %s4 = inlined_call_operand.vmem [shape: bf16[4,64], index: 4, kind: input, shape index: {}]
  %s5 = inlined_call_operand.vmem [shape: bf16[64,32], index: 5, kind: input, shape index: {}]
  %s6 = inlined_call_operand.vmem [shape: bf16[512,32], index: 6, kind: output, shape index: {}]
  %s7 = sld [smem:[#allocation0]]
  $region57: #{tpu_custom_call.1} parent=0
    _
  %s9 = ssub.s32 1, %s7
  %s10 = scalar_select 0, %s9, %s7
  loop: start=0, step=1, limit=4
  $region2: #{tpu_custom_call.1} parent=0 // loop_pre_header
    _
  $region3: #{tpu_custom_call.1} parent=0 // loop_header
    %s12 = sphi 0, %s16
    %p13 = scmp.ge.s32.totalorder %s12, 4
    %s22 = sphi 0, %s24
    %s25 = sphi 0, %s22
    %s26 = sphi 0, %s25
    %s42 = sphi 0, %s26
    %s48 = sphi 0, %s50
    %s51 = sphi 0, %s48
    %s52 = sphi 0, %s51
    %s68 = sphi 0, %s52
    %s72 = sphi 0, %s72
    %s74 = sphi 0, %s72
    %s75 = sphi 0, %s74
    %s89 = sphi 0, %s75
    %s93 = sphi 0, %s93
    %s95 = sphi 0, %s93
    %s96 = sphi 0, %s95
    %s110 = sphi 0, %s96
    %s114 = sphi 0, %s114
    %s116 = sphi 0, %s114
    %s117 = sphi 0, %s116
    %s131 = sphi 0, %s117
    %s135 = sphi 0, %s135
    %s137 = sphi 0, %s135
    %s138 = sphi 0, %s137
    %s152 = sphi 0, %s138
    %s158 = sphi 0, %s160
    %s161 = sphi 0, %s158
    %s162 = sphi 0, %s161
    %s178 = sphi 0, %s162
  $region4: #{tpu_custom_call.1} parent=0 // loop_header_branch
    %15 = sbr.rel (%p13) target = $region8
  $region5: #{tpu_custom_call.1} parent=0 // loop_body
    %s17 = ssub.s32 %s12, 1
    %s18 = ssub.s32 %s12, 2
    %s19 = sadd.s32 %s12, 1
    %s20 = ssub.s32 %s12, %s19
    %p21 = scmp.eq.s32.totalorder %s20, 0
    %s23 = sadd.s32 %s22, 1
    %s24 = scalar_select %p21, %s22, %s23
    %p27 = pneg %p21
    %p28 = scmp.eq.s32.totalorder %s12, 1
    %p29 = por %p27, %p28
    %p30 = scmp.ne.s32.totalorder %s22, %s25
    %p31 = scmp.eq.s32.totalorder %s12, 0
    %p32 = por %p30, %p31
    %p33 = scmp.ne.s32.totalorder %s22, %s25
    %p34 = scmp.eq.s32.totalorder %s17, 1
    %p35 = por %p33, %p34
    %p36 = scmp.ne.s32.totalorder %s25, %s26
    %p37 = scmp.eq.s32.totalorder %s17, 0
    %p38 = por %p36, %p37
    %p39 = scmp.ne.s32.totalorder %s25, %s26
    %p40 = scmp.eq.s32.totalorder %s18, 1
    %p41 = por %p39, %p40
    %p43 = scmp.ne.s32.totalorder %s26, %s42
    %p44 = scmp.eq.s32.totalorder %s18, 0
    %p45 = por %p43, %p44
    %s46 = ssub.s32 %s12, %s19
    %p47 = scmp.eq.s32.totalorder %s46, 0
    %s49 = sadd.s32 %s48, 1
    %s50 = scalar_select %p47, %s48, %s49
    %p53 = pneg %p47
    %p54 = scmp.eq.s32.totalorder %s12, 1
    %p55 = por %p53, %p54
    %p56 = scmp.ne.s32.totalorder %s48, %s51
    %p57 = scmp.eq.s32.totalorder %s12, 0
    %p58 = por %p56, %p57
    %p59 = scmp.ne.s32.totalorder %s48, %s51
    %p60 = scmp.eq.s32.totalorder %s17, 1
    %p61 = por %p59, %p60
    %p62 = scmp.ne.s32.totalorder %s51, %s52
    %p63 = scmp.eq.s32.totalorder %s17, 0
    %p64 = por %p62, %p63
    %p65 = scmp.ne.s32.totalorder %s51, %s52
    %p66 = scmp.eq.s32.totalorder %s18, 1
    %p67 = por %p65, %p66
    %p69 = scmp.ne.s32.totalorder %s52, %s68
    %p70 = scmp.eq.s32.totalorder %s18, 0
    %p71 = por %p69, %p70
    %s73 = sadd.s32 %s72, 1
    %p76 = scmp.eq.s32.totalorder %s12, 1
    %p77 = scmp.ne.s32.totalorder %s72, %s74
    %p78 = scmp.eq.s32.totalorder %s12, 0
    %p79 = por %p77, %p78
    %p80 = scmp.ne.s32.totalorder %s72, %s74
    %p81 = scmp.eq.s32.totalorder %s17, 1
    %p82 = por %p80, %p81
    %p83 = scmp.ne.s32.totalorder %s74, %s75
    %p84 = scmp.eq.s32.totalorder %s17, 0
    %p85 = por %p83, %p84
    %p86 = scmp.ne.s32.totalorder %s74, %s75
    %p87 = scmp.eq.s32.totalorder %s18, 1
    %p88 = por %p86, %p87
    %p90 = scmp.ne.s32.totalorder %s75, %s89
    %p91 = scmp.eq.s32.totalorder %s18, 0
    %p92 = por %p90, %p91
    %s94 = sadd.s32 %s93, 1
    %p97 = scmp.eq.s32.totalorder %s12, 1
    %p98 = scmp.ne.s32.totalorder %s93, %s95
    %p99 = scmp.eq.s32.totalorder %s12, 0
    %p100 = por %p98, %p99
    %p101 = scmp.ne.s32.totalorder %s93, %s95
    %p102 = scmp.eq.s32.totalorder %s17, 1
    %p103 = por %p101, %p102
    %p104 = scmp.ne.s32.totalorder %s95, %s96
    %p105 = scmp.eq.s32.totalorder %s17, 0
    %p106 = por %p104, %p105
    %p107 = scmp.ne.s32.totalorder %s95, %s96
    %p108 = scmp.eq.s32.totalorder %s18, 1
    %p109 = por %p107, %p108
    %p111 = scmp.ne.s32.totalorder %s96, %s110
    %p112 = scmp.eq.s32.totalorder %s18, 0
    %p113 = por %p111, %p112
    %s115 = sadd.s32 %s114, 1
    %p118 = scmp.eq.s32.totalorder %s12, 1
    %p119 = scmp.ne.s32.totalorder %s114, %s116
    %p120 = scmp.eq.s32.totalorder %s12, 0
    %p121 = por %p119, %p120
    %p122 = scmp.ne.s32.totalorder %s114, %s116
    %p123 = scmp.eq.s32.totalorder %s17, 1
    %p124 = por %p122, %p123
    %p125 = scmp.ne.s32.totalorder %s116, %s117
    %p126 = scmp.eq.s32.totalorder %s17, 0
    %p127 = por %p125, %p126
    %p128 = scmp.ne.s32.totalorder %s116, %s117
    %p129 = scmp.eq.s32.totalorder %s18, 1
    %p130 = por %p128, %p129
    %p132 = scmp.ne.s32.totalorder %s117, %s131
    %p133 = scmp.eq.s32.totalorder %s18, 0
    %p134 = por %p132, %p133
    %s136 = sadd.s32 %s135, 1
    %p139 = scmp.eq.s32.totalorder %s12, 1
    %p140 = scmp.ne.s32.totalorder %s135, %s137
    %p141 = scmp.eq.s32.totalorder %s12, 0
    %p142 = por %p140, %p141
    %p143 = scmp.ne.s32.totalorder %s135, %s137
    %p144 = scmp.eq.s32.totalorder %s17, 1
    %p145 = por %p143, %p144
    %p146 = scmp.ne.s32.totalorder %s137, %s138
    %p147 = scmp.eq.s32.totalorder %s17, 0
    %p148 = por %p146, %p147
    %p149 = scmp.ne.s32.totalorder %s137, %s138
    %p150 = scmp.eq.s32.totalorder %s18, 1
    %p151 = por %p149, %p150
    %p153 = scmp.ne.s32.totalorder %s138, %s152
    %p154 = scmp.eq.s32.totalorder %s18, 0
    %p155 = por %p153, %p154
    %s156 = ssub.s32 %s12, %s19
    %p157 = scmp.eq.s32.totalorder %s156, 0
    %s159 = sadd.s32 %s158, 1
    %s160 = scalar_select %p157, %s158, %s159
    %p163 = pneg %p157
    %p164 = scmp.eq.s32.totalorder %s12, 1
    %p165 = por %p163, %p164
    %p166 = scmp.ne.s32.totalorder %s158, %s161
    %p167 = scmp.eq.s32.totalorder %s12, 0
    %p168 = por %p166, %p167
    %p169 = scmp.ne.s32.totalorder %s158, %s161
    %p170 = scmp.eq.s32.totalorder %s17, 1
    %p171 = por %p169, %p170
    %p172 = scmp.ne.s32.totalorder %s161, %s162
    %p173 = scmp.eq.s32.totalorder %s17, 0
    %p174 = por %p172, %p173
    %p175 = scmp.ne.s32.totalorder %s161, %s162
    %p176 = scmp.eq.s32.totalorder %s18, 1
    %p177 = por %p175, %p176
    %p179 = scmp.ne.s32.totalorder %s162, %s178
    %p180 = scmp.eq.s32.totalorder %s18, 0
    %p181 = por %p179, %p180
    %p182 = scmp.le.s32.totalorder 1, %s12
    %p183 = scmp.lt.s32.totalorder %s12, 3
    %p184 = pnand %p182, %p183
    %p185 = pneg %p184
    // Predicated region
    $region9: #{tpu_custom_call.1} parent=5 // pred_check
      _
    $region10: #{tpu_custom_call.1} parent=5 // pred_check_branch
      %187 = sbr.rel (%p184) target = $region12
    $region11: #{tpu_custom_call.1} parent=5 // pred_region
      %s188 = ssub.s32 %s12, 1
      // Predicated region
      $region13: #{tpu_custom_call.1} parent=11 // pred_check
        %p189 = pneg %p85
      $region14: #{tpu_custom_call.1} parent=11 // pred_check_branch
        %191 = sbr.rel (%p189) target = $region16
      $region15: #{tpu_custom_call.1} parent=11 // pred_region
        _
      $region16: #{tpu_custom_call.1} parent=11 // pred_fallthru
        _
      // Predicated region
      $region17: #{tpu_custom_call.1} parent=11 // pred_check
        %p192 = pneg %p106
      $region18: #{tpu_custom_call.1} parent=11 // pred_check_branch
        %194 = sbr.rel (%p192) target = $region20
      $region19: #{tpu_custom_call.1} parent=11 // pred_region
        _
      $region20: #{tpu_custom_call.1} parent=11 // pred_fallthru
        _
      // Predicated region
      $region21: #{tpu_custom_call.1} parent=11 // pred_check
        %p195 = pneg %p127
      $region22: #{tpu_custom_call.1} parent=11 // pred_check_branch
        %197 = sbr.rel (%p195) target = $region24
      $region23: #{tpu_custom_call.1} parent=11 // pred_region
        _
      $region24: #{tpu_custom_call.1} parent=11 // pred_fallthru
        _
      // Predicated region
      $region25: #{tpu_custom_call.1} parent=11 // pred_check
        %p198 = pneg %p148
      $region26: #{tpu_custom_call.1} parent=11 // pred_check_branch
        %200 = sbr.rel (%p198) target = $region28
      $region27: #{tpu_custom_call.1} parent=11 // pred_region
        _
      $region28: #{tpu_custom_call.1} parent=11 // pred_fallthru
        _
    $region12: #{tpu_custom_call.1} parent=5 // pred_fallthru
      _
    %p201 = scmp.lt.s32.totalorder %s12, 2
    // Predicated region
    $region29: #{tpu_custom_call.1} parent=5 // pred_check
      %p202 = pneg %p201
    $region30: #{tpu_custom_call.1} parent=5 // pred_check_branch
      %204 = sbr.rel (%p202) target = $region32
    $region31: #{tpu_custom_call.1} parent=5 // pred_region
      // Predicated region
      $region33: #{tpu_custom_call.1} parent=31 // pred_check
        %p205 = pneg %p32
      $region34: #{tpu_custom_call.1} parent=31 // pred_check_branch
        %207 = sbr.rel (%p205) target = $region36
      $region35: #{tpu_custom_call.1} parent=31 // pred_region
        %s208 = smul.u32 32, %s12
        %p209 = scmp.lt.s32.totalorder %s208, 63
        %s210 = scalar_select %p209, %s208, 63
        %s211 = smul.addr %s210, 8
        %s212 = scalar_lea.vmem %s0, %s211
        %s213 = smul.u32 32, %s12
      $region36: #{tpu_custom_call.1} parent=31 // pred_fallthru
        _
      // Predicated region
      $region37: #{tpu_custom_call.1} parent=31 // pred_check
        %p214 = pneg %p58
      $region38: #{tpu_custom_call.1} parent=31 // pred_check_branch
        %216 = sbr.rel (%p214) target = $region40
      $region39: #{tpu_custom_call.1} parent=31 // pred_region
        %s217 = smul.u32 32, %s12
        %p218 = scmp.lt.s32.totalorder %s217, 63
        %s219 = scalar_select %p218, %s217, 63
        %s220 = smul.addr %s219, 8
        %s221 = scalar_lea.vmem %s1, %s220
        %s222 = smul.u32 32, %s12
      $region40: #{tpu_custom_call.1} parent=31 // pred_fallthru
        _
    $region32: #{tpu_custom_call.1} parent=5 // pred_fallthru
      _
    %p223 = scmp.le.s32.totalorder 1, %s12
    %p224 = scmp.lt.s32.totalorder %s12, 3
    %p225 = pnand %p223, %p224
    %p226 = pneg %p225
    // Predicated region
    $region41: #{tpu_custom_call.1} parent=5 // pred_check
      _
    $region42: #{tpu_custom_call.1} parent=5 // pred_check_branch
      %228 = sbr.rel (%p225) target = $region44
    $region43: #{tpu_custom_call.1} parent=5 // pred_region
      %s229 = ssub.s32 %s12, 1
      %s230 = smul.u32 32, %s17
      %p231 = scmp.lt.s32.totalorder %s230, 63
      %s232 = scalar_select %p231, %s230, 63
      %s233 = smul.addr %s232, 8
      %s234 = scalar_lea.vmem %s0, %s233
      %p235 = pneg %p38
      %p236 = pneg %p35
      %s237 = smul.u32 32, %s17
      %p238 = scmp.lt.s32.totalorder %s237, 63
      %s239 = scalar_select %p238, %s237, 63
      %s240 = smul.addr %s239, 8
      %s241 = scalar_lea.vmem %s1, %s240
      %p242 = pneg %p64
      %p243 = pneg %p61
      %p244 = pneg %p85
      %p245 = pneg %p82
      %p246 = pneg %p106
      %p247 = pneg %p103
      %p248 = pneg %p127
      %p249 = pneg %p124
      %p250 = pneg %p148
      %p251 = pneg %p145
      %p252 = pneg %p174
      %p253 = pneg %p171
      %s254 = smul.u32 32, %s17
      %p255 = scmp.lt.s32.totalorder %s254, 63
      %s256 = scalar_select %p255, %s254, 63
      %s257 = smul.addr %s256, 4
      %s258 = scalar_lea.vmem %s6, %s257
      %s259 = smul.u32 32, %s17
      %p260 = scmp.lt.s32.totalorder %s259, 63
      %s261 = scalar_select %p260, %s259, 63
      %s262 = smul.addr %s261, 8
      %s263 = scalar_lea.vmem %s0, %s262
      %s264 = smul.u32 32, %s17
      %s265 = smul.u32 32, %s17
      %p266 = scmp.lt.s32.totalorder %s265, 63
      %s267 = scalar_select %p266, %s265, 63
      %s268 = smul.addr %s267, 8
      %s269 = scalar_lea.vmem %s1, %s268
      %s270 = smul.u32 32, %s17
      %s271 = smul.u32 32, %s17
      %p272 = scmp.lt.s32.totalorder %s271, 63
      %s273 = scalar_select %p272, %s271, 63
      %s274 = smul.addr %s273, 4
      %s275 = scalar_lea.vmem %s6, %s274
      %s276 = smul.u32 32, %s17
      %v278 = vld [vmem:[%s263] sm:$0xff]
      %v279 = vld [vmem:[%s263 + $0x8] sm:$0xff]
      %v280 = vld [vmem:[%s263 + $0x10] sm:$0xff]
      %v281 = vld [vmem:[%s263 + $0x18] sm:$0xff]
      %v282 = vld [vmem:[%s263 + $0x20] sm:$0xff]
      %v283 = vld [vmem:[%s263 + $0x28] sm:$0xff]
      %v284 = vld [vmem:[%s263 + $0x30] sm:$0xff]
      %v285 = vld [vmem:[%s263 + $0x38] sm:$0xff]
      %v286 = vld [vmem:[%s263 + $0x40] sm:$0xff]
      %v287 = vld [vmem:[%s263 + $0x48] sm:$0xff]
      %v288 = vld [vmem:[%s263 + $0x50] sm:$0xff]
      %v289 = vld [vmem:[%s263 + $0x58] sm:$0xff]
      %v290 = vld [vmem:[%s263 + $0x60] sm:$0xff]
      %v291 = vld [vmem:[%s263 + $0x68] sm:$0xff]
      %v292 = vld [vmem:[%s263 + $0x70] sm:$0xff]
      %v293 = vld [vmem:[%s263 + $0x78] sm:$0xff]
      %v294 = vld [vmem:[%s263 + $0x80] sm:$0xff]
      %v295 = vld [vmem:[%s263 + $0x88] sm:$0xff]
      %v296 = vld [vmem:[%s263 + $0x90] sm:$0xff]
      %v297 = vld [vmem:[%s263 + $0x98] sm:$0xff]
      %v298 = vld [vmem:[%s263 + $0xa0] sm:$0xff]
      %v299 = vld [vmem:[%s263 + $0xa8] sm:$0xff]
      %v300 = vld [vmem:[%s263 + $0xb0] sm:$0xff]
      %v301 = vld [vmem:[%s263 + $0xb8] sm:$0xff]
      %v302 = vld [vmem:[%s263 + $0xc0] sm:$0xff]
      %v303 = vld [vmem:[%s263 + $0xc8] sm:$0xff]
      %v304 = vld [vmem:[%s263 + $0xd0] sm:$0xff]
      %v305 = vld [vmem:[%s263 + $0xd8] sm:$0xff]
      %v306 = vld [vmem:[%s263 + $0xe0] sm:$0xff]
      %v307 = vld [vmem:[%s263 + $0xe8] sm:$0xff]
      %v308 = vld [vmem:[%s263 + $0xf0] sm:$0xff]
      %v309 = vld [vmem:[%s263 + $0xf8] sm:$0xff]
      %v310 = vld [vmem:[%s2] sm:$0xf]
      %v311 = vld [vmem:[%s2 + $0x4] sm:$0xf]
      %v312 = vld [vmem:[%s2 + $0x8] sm:$0xf]
      %v313 = vld [vmem:[%s2 + $0xc] sm:$0xf]
      %v314 = vld [vmem:[%s2 + $0x10] sm:$0xf]
      %v315 = vld [vmem:[%s2 + $0x14] sm:$0xf]
      %v316 = vld [vmem:[%s2 + $0x18] sm:$0xf]
      %v317 = vld [vmem:[%s2 + $0x1c] sm:$0xf]
      %v318 = vpack.c.bf16 %v279, %v278
      %v319 = vpack.c.bf16 %v281, %v280
      %v320 = vpack.c.bf16 %v283, %v282
      %v321 = vpack.c.bf16 %v285, %v284
      %v322 = vpack.c.bf16 %v287, %v286
      %v323 = vpack.c.bf16 %v289, %v288
      %v324 = vpack.c.bf16 %v291, %v290
      %v325 = vpack.c.bf16 %v293, %v292
      %v326 = vpack.c.bf16 %v295, %v294
      %v327 = vpack.c.bf16 %v297, %v296
      %v328 = vpack.c.bf16 %v299, %v298
      %v329 = vpack.c.bf16 %v301, %v300
      %v330 = vpack.c.bf16 %v303, %v302
      %v331 = vpack.c.bf16 %v305, %v304
      %v332 = vpack.c.bf16 %v307, %v306
      %v333 = vpack.c.bf16 %v309, %v308
      %v334 = vld [vmem:[%s3] sm:$0x1]
      %v336 = vlaneseq
      %v337 = vshrl.u32 %v336, 7
      %v338 = vsub.s32 0, %v337
      %v339 = vrot.slane %v334, %v338
      %v349 = vunpack.c.l.b16 %v310
      %v350 = vunpack.c.l.b16 %v311
      %v351 = vunpack.c.l.b16 %v312
      %v352 = vunpack.c.l.b16 %v313
      %v353 = vunpack.c.l.b16 %v314
      %v354 = vunpack.c.l.b16 %v315
      %v355 = vunpack.c.l.b16 %v316
      %v356 = vunpack.c.l.b16 %v317
      %v357 = vpack.c.b16 %v350, %v349
      %v358 = vpack.c.b16 %v352, %v351
      %v359 = vpack.c.b16 %v354, %v353
      %v360 = vpack.c.b16 %v356, %v355
      %vm365 = vcmask 523264
      %v367 = vsel %vm365, %v318, 0
      %v370 = vsel %vm365, %v319, 0
      %v373 = vsel %vm365, %v320, 0
      %v376 = vsel %vm365, %v321, 0
      %v379 = vsel %vm365, %v322, 0
      %v382 = vsel %vm365, %v323, 0
      %v385 = vsel %vm365, %v324, 0
      %v388 = vsel %vm365, %v325, 0
      %v391 = vsel %vm365, %v326, 0
      %v394 = vsel %vm365, %v327, 0
      %v397 = vsel %vm365, %v328, 0
      %v400 = vsel %vm365, %v329, 0
      %v403 = vsel %vm365, %v330, 0
      %v406 = vsel %vm365, %v331, 0
      %v409 = vsel %vm365, %v332, 0
      %v412 = vsel %vm365, %v333, 0
      %414 = vmatprep.subr.bf16.mxu0 0
      %415 = vmatpush1.bf16.msra.mxu0 %v357
      %416 = vmatprep.subr.bf16.mxu0 0
      %417 = vmatpush1.bf16.msra.mxu0 %v358
      %418 = vmatprep.subr.bf16.mxu0 0
      %419 = vmatpush1.bf16.msra.mxu0 %v359
      %420 = vmatprep.subr.bf16.mxu0 0
      %421 = vmatpush1.bf16.msra.mxu0 %v360
      %422 = vmatprep.subr.bf16.mxu0 0
      %423 = vmatpush1.bf16.msra.mxu0 0
      %424 = vmatprep.subr.bf16.mxu0 0
      %425 = vmatpush1.bf16.msra.mxu0 0
      %426 = vmatprep.subr.bf16.mxu0 0
      %427 = vmatpush1.bf16.msra.mxu0 0
      %428 = vmatprep.subr.bf16.mxu0 0
      %429 = vmatpush1.bf16.msra.mxu0 0
      %430 = vmatprep.subr.bf16.mxu0 0
      %431 = vmatpush1.bf16.msra.mxu0 0
      %432 = vmatprep.subr.bf16.mxu0 0
      %433 = vmatpush1.bf16.msra.mxu0 0
      %434 = vmatprep.subr.bf16.mxu0 0
      %435 = vmatpush1.bf16.msra.mxu0 0
      %436 = vmatprep.subr.bf16.mxu0 0
      %437 = vmatpush1.bf16.msra.mxu0 0
      %438 = vmatprep.subr.bf16.mxu0 0
      %439 = vmatpush1.bf16.msra.mxu0 0
      %440 = vmatprep.subr.bf16.mxu0 0
      %441 = vmatpush1.bf16.msra.mxu0 0
      %442 = vmatprep.subr.bf16.mxu0 0
      %443 = vmatpush1.bf16.msra.mxu0 0
      %444 = vmatprep.subr.bf16.mxu0 0
      %445 = vmatpush1.bf16.msra.mxu0 0
      %446 = vmatprep.mubr.bf16.mxu0 0
      %447 = vmatmul.mubr.bf16.gmra.mrb[0].mxu0 %v367
      %v448 = vpop.f32.mrb[0].mxu0
      %v449 = vadd.f32 %v339, %v448
      %v450 = vpop.f32.mrb[0].mxu0
      %v451 = vpop.f32.mrb[0].mxu0
      %v452 = vadd.f32 %v339, %v451
      %v453 = vpop.f32.mrb[0].mxu0
      %454 = vmatprep.mubr.bf16.mxu0 0
      %455 = vmatmul.mubr.bf16.gmra.mrb[0].mxu0 %v370
      %v456 = vpop.f32.mrb[0].mxu0
      %v457 = vadd.f32 %v339, %v456
      %v458 = vpop.f32.mrb[0].mxu0
      %v459 = vpop.f32.mrb[0].mxu0
      %v460 = vadd.f32 %v339, %v459
      %v461 = vpop.f32.mrb[0].mxu0
      %462 = vmatprep.mubr.bf16.mxu0 0
      %463 = vmatmul.mubr.bf16.gmra.mrb[0].mxu0 %v373
      %v464 = vpop.f32.mrb[0].mxu0
      %v465 = vadd.f32 %v339, %v464
      %v466 = vpop.f32.mrb[0].mxu0
      %v467 = vpop.f32.mrb[0].mxu0
      %v468 = vadd.f32 %v339, %v467
      %v469 = vpop.f32.mrb[0].mxu0
      %470 = vmatprep.mubr.bf16.mxu0 0
      %471 = vmatmul.mubr.bf16.gmra.mrb[0].mxu0 %v376
      %v472 = vpop.f32.mrb[0].mxu0
      %v473 = vadd.f32 %v339, %v472
      %v474 = vpop.f32.mrb[0].mxu0
      %v475 = vpop.f32.mrb[0].mxu0
      %v476 = vadd.f32 %v339, %v475
      %v477 = vpop.f32.mrb[0].mxu0
      %478 = vmatprep.mubr.bf16.mxu0 0
      %479 = vmatmul.mubr.bf16.gmra.mrb[0].mxu0 %v379
      %v480 = vpop.f32.mrb[0].mxu0
      %v481 = vadd.f32 %v339, %v480
      %v482 = vpop.f32.mrb[0].mxu0
      %v483 = vpop.f32.mrb[0].mxu0
      %v484 = vadd.f32 %v339, %v483
      %v485 = vpop.f32.mrb[0].mxu0
      %486 = vmatprep.mubr.bf16.mxu0 0
      %487 = vmatmul.mubr.bf16.gmra.mrb[0].mxu0 %v382
      %v488 = vpop.f32.mrb[0].mxu0
      %v489 = vadd.f32 %v339, %v488
      %v490 = vpop.f32.mrb[0].mxu0
      %v491 = vpop.f32.mrb[0].mxu0
      %v492 = vadd.f32 %v339, %v491
      %v493 = vpop.f32.mrb[0].mxu0
      %494 = vmatprep.mubr.bf16.mxu0 0
      %495 = vmatmul.mubr.bf16.gmra.mrb[0].mxu0 %v385
      %v496 = vpop.f32.mrb[0].mxu0
      %v497 = vadd.f32 %v339, %v496
      %v498 = vpop.f32.mrb[0].mxu0
      %v499 = vpop.f32.mrb[0].mxu0
      %v500 = vadd.f32 %v339, %v499
      %v501 = vpop.f32.mrb[0].mxu0
      %502 = vmatprep.mubr.bf16.mxu0 0
      %503 = vmatmul.mubr.bf16.gmra.mrb[0].mxu0 %v388
      %v504 = vpop.f32.mrb[0].mxu0
      %v505 = vadd.f32 %v339, %v504
      %v506 = vpop.f32.mrb[0].mxu0
      %v507 = vpop.f32.mrb[0].mxu0
      %v508 = vadd.f32 %v339, %v507
      %v509 = vpop.f32.mrb[0].mxu0
      %510 = vmatprep.mubr.bf16.mxu0 0
      %511 = vmatmul.mubr.bf16.gmra.mrb[0].mxu0 %v391
      %v512 = vpop.f32.mrb[0].mxu0
      %v513 = vadd.f32 %v339, %v512
      %v514 = vpop.f32.mrb[0].mxu0
      %v515 = vpop.f32.mrb[0].mxu0
      %v516 = vadd.f32 %v339, %v515
      %v517 = vpop.f32.mrb[0].mxu0
      %518 = vmatprep.mubr.bf16.mxu0 0
      %519 = vmatmul.mubr.bf16.gmra.mrb[0].mxu0 %v394
      %v520 = vpop.f32.mrb[0].mxu0
      %v521 = vadd.f32 %v339, %v520
      %v522 = vpop.f32.mrb[0].mxu0
      %v523 = vpop.f32.mrb[0].mxu0
      %v524 = vadd.f32 %v339, %v523
      %v525 = vpop.f32.mrb[0].mxu0
      %526 = vmatprep.mubr.bf16.mxu0 0
      %527 = vmatmul.mubr.bf16.gmra.mrb[0].mxu0 %v397
      %v528 = vpop.f32.mrb[0].mxu0
      %v529 = vadd.f32 %v339, %v528
      %v530 = vpop.f32.mrb[0].mxu0
      %v531 = vpop.f32.mrb[0].mxu0
      %v532 = vadd.f32 %v339, %v531
      %v533 = vpop.f32.mrb[0].mxu0
      %534 = vmatprep.mubr.bf16.mxu0 0
      %535 = vmatmul.mubr.bf16.gmra.mrb[0].mxu0 %v400
      %v536 = vpop.f32.mrb[0].mxu0
      %v537 = vadd.f32 %v339, %v536
      %v538 = vpop.f32.mrb[0].mxu0
      %v539 = vpop.f32.mrb[0].mxu0
      %v540 = vadd.f32 %v339, %v539
      %v541 = vpop.f32.mrb[0].mxu0
      %542 = vmatprep.mubr.bf16.mxu0 0
      %543 = vmatmul.mubr.bf16.gmra.mrb[0].mxu0 %v403
      %v544 = vpop.f32.mrb[0].mxu0
      %v545 = vadd.f32 %v339, %v544
      %v546 = vpop.f32.mrb[0].mxu0
      %v547 = vpop.f32.mrb[0].mxu0
      %v548 = vadd.f32 %v339, %v547
      %v549 = vpop.f32.mrb[0].mxu0
      %550 = vmatprep.mubr.bf16.mxu0 0
      %551 = vmatmul.mubr.bf16.gmra.mrb[0].mxu0 %v406
      %v552 = vpop.f32.mrb[0].mxu0
      %v553 = vadd.f32 %v339, %v552
      %v554 = vpop.f32.mrb[0].mxu0
      %v555 = vpop.f32.mrb[0].mxu0
      %v556 = vadd.f32 %v339, %v555
      %v557 = vpop.f32.mrb[0].mxu0
      %558 = vmatprep.mubr.bf16.mxu0 0
      %559 = vmatmul.mubr.bf16.gmra.mrb[0].mxu0 %v409
      %v560 = vpop.f32.mrb[0].mxu0
      %v561 = vadd.f32 %v339, %v560
      %v562 = vpop.f32.mrb[0].mxu0
      %v563 = vpop.f32.mrb[0].mxu0
      %v564 = vadd.f32 %v339, %v563
      %v565 = vpop.f32.mrb[0].mxu0
      %566 = vmatprep.mubr.bf16.mxu0 0
      %567 = vmatmul.mubr.bf16.gmra.mrb[0].mxu0 %v412
      %v568 = vpop.f32.mrb[0].mxu0
      %v569 = vadd.f32 %v339, %v568
      %v570 = vpop.f32.mrb[0].mxu0
      %v571 = vpop.f32.mrb[0].mxu0
      %v572 = vadd.f32 %v339, %v571
      %v573 = vpop.f32.mrb[0].mxu0
      %574 = vdwg.mxu0
      %v575 = vxor.u32 %v449, 2147483648
      %v576 = vxor.u32 %v452, 2147483648
      %v577 = vxor.u32 %v457, 2147483648
      %v578 = vxor.u32 %v460, 2147483648
      %v579 = vxor.u32 %v465, 2147483648
      %v580 = vxor.u32 %v468, 2147483648
      %v581 = vxor.u32 %v473, 2147483648
      %v582 = vxor.u32 %v476, 2147483648
      %v583 = vxor.u32 %v481, 2147483648
      %v584 = vxor.u32 %v484, 2147483648
      %v585 = vxor.u32 %v489, 2147483648
      %v586 = vxor.u32 %v492, 2147483648
      %v587 = vxor.u32 %v497, 2147483648
      %v588 = vxor.u32 %v500, 2147483648
      %v589 = vxor.u32 %v505, 2147483648
      %v590 = vxor.u32 %v508, 2147483648
      %v591 = vxor.u32 %v513, 2147483648
      %v592 = vxor.u32 %v516, 2147483648
      %v593 = vxor.u32 %v521, 2147483648
      %v594 = vxor.u32 %v524, 2147483648
      %v595 = vxor.u32 %v529, 2147483648
      %v596 = vxor.u32 %v532, 2147483648
      %v597 = vxor.u32 %v537, 2147483648
      %v598 = vxor.u32 %v540, 2147483648
      %v599 = vxor.u32 %v545, 2147483648
      %v600 = vxor.u32 %v548, 2147483648
      %v601 = vxor.u32 %v553, 2147483648
      %v602 = vxor.u32 %v556, 2147483648
      %v603 = vxor.u32 %v561, 2147483648
      %v604 = vxor.u32 %v564, 2147483648
      %v605 = vxor.u32 %v569, 2147483648
      %v606 = vxor.u32 %v572, 2147483648
      %v607 = vmul.f32 %v575, 1.442695
      %v608 = vpow.pop %v607
      %v609 = vmul.f32 %v576, 1.442695
      %v610 = vpow.pop %v609
      %v611 = vmul.f32 %v577, 1.442695
      %v612 = vpow.pop %v611
      %v613 = vmul.f32 %v578, 1.442695
      %v614 = vpow.pop %v613
      %v615 = vmul.f32 %v579, 1.442695
      %v616 = vpow.pop %v615
      %v617 = vmul.f32 %v580, 1.442695
      %v618 = vpow.pop %v617
      %v619 = vmul.f32 %v581, 1.442695
      %v620 = vpow.pop %v619
      %v621 = vmul.f32 %v582, 1.442695
      %v622 = vpow.pop %v621
      %v623 = vmul.f32 %v583, 1.442695
      %v624 = vpow.pop %v623
      %v625 = vmul.f32 %v584, 1.442695
      %v626 = vpow.pop %v625
      %v627 = vmul.f32 %v585, 1.442695
      %v628 = vpow.pop %v627
      %v629 = vmul.f32 %v586, 1.442695
      %v630 = vpow.pop %v629
      %v631 = vmul.f32 %v587, 1.442695
      %v632 = vpow.pop %v631
      %v633 = vmul.f32 %v588, 1.442695
      %v634 = vpow.pop %v633
      %v635 = vmul.f32 %v589, 1.442695
      %v636 = vpow.pop %v635
      %v637 = vmul.f32 %v590, 1.442695
      %v638 = vpow.pop %v637
      %v639 = vmul.f32 %v591, 1.442695
      %v640 = vpow.pop %v639
      %v641 = vmul.f32 %v592, 1.442695
      %v642 = vpow.pop %v641
      %v643 = vmul.f32 %v593, 1.442695
      %v644 = vpow.pop %v643
      %v645 = vmul.f32 %v594, 1.442695
      %v646 = vpow.pop %v645
      %v647 = vmul.f32 %v595, 1.442695
      %v648 = vpow.pop %v647
      %v649 = vmul.f32 %v596, 1.442695
      %v650 = vpow.pop %v649
      %v651 = vmul.f32 %v597, 1.442695
      %v652 = vpow.pop %v651
      %v653 = vmul.f32 %v598, 1.442695
      %v654 = vpow.pop %v653
      %v655 = vmul.f32 %v599, 1.442695
      %v656 = vpow.pop %v655
      %v657 = vmul.f32 %v600, 1.442695
      %v658 = vpow.pop %v657
      %v659 = vmul.f32 %v601, 1.442695
      %v660 = vpow.pop %v659
      %v661 = vmul.f32 %v602, 1.442695
      %v662 = vpow.pop %v661
      %v663 = vmul.f32 %v603, 1.442695
      %v664 = vpow.pop %v663
      %v665 = vmul.f32 %v604, 1.442695
      %v666 = vpow.pop %v665
      %v667 = vmul.f32 %v605, 1.442695
      %v668 = vpow.pop %v667
      %v669 = vmul.f32 %v606, 1.442695
      %v670 = vpow.pop %v669
      %v671 = vadd.f32 %v608, 1.0
      %v672 = vadd.f32 %v610, 1.0
      %v673 = vadd.f32 %v612, 1.0
      %v674 = vadd.f32 %v614, 1.0
      %v675 = vadd.f32 %v616, 1.0
      %v676 = vadd.f32 %v618, 1.0
      %v677 = vadd.f32 %v620, 1.0
      %v678 = vadd.f32 %v622, 1.0
      %v679 = vadd.f32 %v624, 1.0
      %v680 = vadd.f32 %v626, 1.0
      %v681 = vadd.f32 %v628, 1.0
      %v682 = vadd.f32 %v630, 1.0
      %v683 = vadd.f32 %v632, 1.0
      %v684 = vadd.f32 %v634, 1.0
      %v685 = vadd.f32 %v636, 1.0
      %v686 = vadd.f32 %v638, 1.0
      %v687 = vadd.f32 %v640, 1.0
      %v688 = vadd.f32 %v642, 1.0
      %v689 = vadd.f32 %v644, 1.0
      %v690 = vadd.f32 %v646, 1.0
      %v691 = vadd.f32 %v648, 1.0
      %v692 = vadd.f32 %v650, 1.0
      %v693 = vadd.f32 %v652, 1.0
      %v694 = vadd.f32 %v654, 1.0
      %v695 = vadd.f32 %v656, 1.0
      %v696 = vadd.f32 %v658, 1.0
      %v697 = vadd.f32 %v660, 1.0
      %v698 = vadd.f32 %v662, 1.0
      %v699 = vadd.f32 %v664, 1.0
      %v700 = vadd.f32 %v666, 1.0
      %v701 = vadd.f32 %v668, 1.0
      %v702 = vadd.f32 %v670, 1.0
      %v703 = vrcp.pop %v671
      %v704 = vmul.f32 1.0, %v703
      %v705 = vrcp.pop %v672
      %v706 = vmul.f32 1.0, %v705
      %v707 = vrcp.pop %v673
      %v708 = vmul.f32 1.0, %v707
      %v709 = vrcp.pop %v674
      %v710 = vmul.f32 1.0, %v709
      %v711 = vrcp.pop %v675
      %v712 = vmul.f32 1.0, %v711
      %v713 = vrcp.pop %v676
      %v714 = vmul.f32 1.0, %v713
      %v715 = vrcp.pop %v677
      %v716 = vmul.f32 1.0, %v715
      %v717 = vrcp.pop %v678
      %v718 = vmul.f32 1.0, %v717
      %v719 = vrcp.pop %v679
      %v720 = vmul.f32 1.0, %v719
      %v721 = vrcp.pop %v680
      %v722 = vmul.f32 1.0, %v721
      %v723 = vrcp.pop %v681
      %v724 = vmul.f32 1.0, %v723
      %v725 = vrcp.pop %v682
      %v726 = vmul.f32 1.0, %v725
      %v727 = vrcp.pop %v683
      %v728 = vmul.f32 1.0, %v727
      %v729 = vrcp.pop %v684
      %v730 = vmul.f32 1.0, %v729
      %v731 = vrcp.pop %v685
      %v732 = vmul.f32 1.0, %v731
      %v733 = vrcp.pop %v686
      %v734 = vmul.f32 1.0, %v733
      %v735 = vrcp.pop %v687
      %v736 = vmul.f32 1.0, %v735
      %v737 = vrcp.pop %v688
      %v738 = vmul.f32 1.0, %v737
      %v739 = vrcp.pop %v689
      %v740 = vmul.f32 1.0, %v739
      %v741 = vrcp.pop %v690
      %v742 = vmul.f32 1.0, %v741
      %v743 = vrcp.pop %v691
      %v744 = vmul.f32 1.0, %v743
      %v745 = vrcp.pop %v692
      %v746 = vmul.f32 1.0, %v745
      %v747 = vrcp.pop %v693
      %v748 = vmul.f32 1.0, %v747
      %v749 = vrcp.pop %v694
      %v750 = vmul.f32 1.0, %v749
      %v751 = vrcp.pop %v695
      %v752 = vmul.f32 1.0, %v751
      %v753 = vrcp.pop %v696
      %v754 = vmul.f32 1.0, %v753
      %v755 = vrcp.pop %v697
      %v756 = vmul.f32 1.0, %v755
      %v757 = vrcp.pop %v698
      %v758 = vmul.f32 1.0, %v757
      %v759 = vrcp.pop %v699
      %v760 = vmul.f32 1.0, %v759
      %v761 = vrcp.pop %v700
      %v762 = vmul.f32 1.0, %v761
      %v763 = vrcp.pop %v701
      %v764 = vmul.f32 1.0, %v763
      %v765 = vrcp.pop %v702
      %v766 = vmul.f32 1.0, %v765
      %v767 = vmul.f32 %v449, %v704
      %v768 = vmul.f32 %v452, %v706
      %v769 = vmul.f32 %v457, %v708
      %v770 = vmul.f32 %v460, %v710
      %v771 = vmul.f32 %v465, %v712
      %v772 = vmul.f32 %v468, %v714
      %v773 = vmul.f32 %v473, %v716
      %v774 = vmul.f32 %v476, %v718
      %v775 = vmul.f32 %v481, %v720
      %v776 = vmul.f32 %v484, %v722
      %v777 = vmul.f32 %v489, %v724
      %v778 = vmul.f32 %v492, %v726
      %v779 = vmul.f32 %v497, %v728
      %v780 = vmul.f32 %v500, %v730
      %v781 = vmul.f32 %v505, %v732
      %v782 = vmul.f32 %v508, %v734
      %v783 = vmul.f32 %v513, %v736
      %v784 = vmul.f32 %v516, %v738
      %v785 = vmul.f32 %v521, %v740
      %v786 = vmul.f32 %v524, %v742
      %v787 = vmul.f32 %v529, %v744
      %v788 = vmul.f32 %v532, %v746
      %v789 = vmul.f32 %v537, %v748
      %v790 = vmul.f32 %v540, %v750
      %v791 = vmul.f32 %v545, %v752
      %v792 = vmul.f32 %v548, %v754
      %v793 = vmul.f32 %v553, %v756
      %v794 = vmul.f32 %v556, %v758
      %v795 = vmul.f32 %v561, %v760
      %v796 = vmul.f32 %v564, %v762
      %v797 = vmul.f32 %v569, %v764
      %v798 = vmul.f32 %v572, %v766
      %v799 = vld [vmem:[%s269] sm:$0xff]
      %v800 = vld [vmem:[%s269 + $0x8] sm:$0xff]
      %v801 = vld [vmem:[%s269 + $0x10] sm:$0xff]
      %v802 = vld [vmem:[%s269 + $0x18] sm:$0xff]
      %v803 = vld [vmem:[%s269 + $0x20] sm:$0xff]
      %v804 = vld [vmem:[%s269 + $0x28] sm:$0xff]
      %v805 = vld [vmem:[%s269 + $0x30] sm:$0xff]
      %v806 = vld [vmem:[%s269 + $0x38] sm:$0xff]
      %v807 = vld [vmem:[%s269 + $0x40] sm:$0xff]
      %v808 = vld [vmem:[%s269 + $0x48] sm:$0xff]
      %v809 = vld [vmem:[%s269 + $0x50] sm:$0xff]
      %v810 = vld [vmem:[%s269 + $0x58] sm:$0xff]
      %v811 = vld [vmem:[%s269 + $0x60] sm:$0xff]
      %v812 = vld [vmem:[%s269 + $0x68] sm:$0xff]
      %v813 = vld [vmem:[%s269 + $0x70] sm:$0xff]
      %v814 = vld [vmem:[%s269 + $0x78] sm:$0xff]
      %v815 = vld [vmem:[%s269 + $0x80] sm:$0xff]
      %v816 = vld [vmem:[%s269 + $0x88] sm:$0xff]
      %v817 = vld [vmem:[%s269 + $0x90] sm:$0xff]
      %v818 = vld [vmem:[%s269 + $0x98] sm:$0xff]
      %v819 = vld [vmem:[%s269 + $0xa0] sm:$0xff]
      %v820 = vld [vmem:[%s269 + $0xa8] sm:$0xff]
      %v821 = vld [vmem:[%s269 + $0xb0] sm:$0xff]
      %v822 = vld [vmem:[%s269 + $0xb8] sm:$0xff]
      %v823 = vld [vmem:[%s269 + $0xc0] sm:$0xff]
      %v824 = vld [vmem:[%s269 + $0xc8] sm:$0xff]
      %v825 = vld [vmem:[%s269 + $0xd0] sm:$0xff]
      %v826 = vld [vmem:[%s269 + $0xd8] sm:$0xff]
      %v827 = vld [vmem:[%s269 + $0xe0] sm:$0xff]
      %v828 = vld [vmem:[%s269 + $0xe8] sm:$0xff]
      %v829 = vld [vmem:[%s269 + $0xf0] sm:$0xff]
      %v830 = vld [vmem:[%s269 + $0xf8] sm:$0xff]
      %v831 = vld [vmem:[%s4] sm:$0x3]
      %v832 = vpack.c.bf16 %v800, %v799
      %v833 = vpack.c.bf16 %v802, %v801
      %v834 = vpack.c.bf16 %v804, %v803
      %v835 = vpack.c.bf16 %v806, %v805
      %v836 = vpack.c.bf16 %v808, %v807
      %v837 = vpack.c.bf16 %v810, %v809
      %v838 = vpack.c.bf16 %v812, %v811
      %v839 = vpack.c.bf16 %v814, %v813
      %v840 = vpack.c.bf16 %v816, %v815
      %v841 = vpack.c.bf16 %v818, %v817
      %v842 = vpack.c.bf16 %v820, %v819
      %v843 = vpack.c.bf16 %v822, %v821
      %v844 = vpack.c.bf16 %v824, %v823
      %v845 = vpack.c.bf16 %v826, %v825
      %v846 = vpack.c.bf16 %v828, %v827
      %v847 = vpack.c.bf16 %v830, %v829
      %vm848 = vcmask 31744
      %v850 = vsel %vm848, %v832, 0
      %v853 = vsel %vm848, %v833, 0
      %v856 = vsel %vm848, %v834, 0
      %v859 = vsel %vm848, %v835, 0
      %v862 = vsel %vm848, %v836, 0
      %v865 = vsel %vm848, %v837, 0
      %v868 = vsel %vm848, %v838, 0
      %v871 = vsel %vm848, %v839, 0
      %v874 = vsel %vm848, %v840, 0
      %v877 = vsel %vm848, %v841, 0
      %v880 = vsel %vm848, %v842, 0
      %v883 = vsel %vm848, %v843, 0
      %v886 = vsel %vm848, %v844, 0
      %v889 = vsel %vm848, %v845, 0
      %v892 = vsel %vm848, %v846, 0
      %v895 = vsel %vm848, %v847, 0
      %vm897 = vcmask 1041408
      %v899 = vsel %vm897, %v831, 0
      %901 = vmatprep.subr.bf16.mxu0 0
      %902 = vmatpush1.bf16.msra.mxu0 %v899
      %903 = vmatprep.subr.bf16.mxu0 0
      %904 = vmatpush1.bf16.msra.mxu0 0
      %905 = vmatprep.subr.bf16.mxu0 0
      %906 = vmatpush1.bf16.msra.mxu0 0
      %907 = vmatprep.subr.bf16.mxu0 0
      %908 = vmatpush1.bf16.msra.mxu0 0
      %909 = vmatprep.subr.bf16.mxu0 0
      %910 = vmatpush1.bf16.msra.mxu0 0
      %911 = vmatprep.subr.bf16.mxu0 0
      %912 = vmatpush1.bf16.msra.mxu0 0
      %913 = vmatprep.subr.bf16.mxu0 0
      %914 = vmatpush1.bf16.msra.mxu0 0
      %915 = vmatprep.subr.bf16.mxu0 0
      %916 = vmatpush1.bf16.msra.mxu0 0
      %917 = vmatprep.subr.bf16.mxu0 0
      %918 = vmatpush1.bf16.msra.mxu0 0
      %919 = vmatprep.subr.bf16.mxu0 0
      %920 = vmatpush1.bf16.msra.mxu0 0
      %921 = vmatprep.subr.bf16.mxu0 0
      %922 = vmatpush1.bf16.msra.mxu0 0
      %923 = vmatprep.subr.bf16.mxu0 0
      %924 = vmatpush1.bf16.msra.mxu0 0
      %925 = vmatprep.subr.bf16.mxu0 0
      %926 = vmatpush1.bf16.msra.mxu0 0
      %927 = vmatprep.subr.bf16.mxu0 0
      %928 = vmatpush1.bf16.msra.mxu0 0
      %929 = vmatprep.subr.bf16.mxu0 0
      %930 = vmatpush1.bf16.msra.mxu0 0
      %931 = vmatprep.subr.bf16.mxu0 0
      %932 = vmatpush1.bf16.msra.mxu0 0
      %933 = vmatprep.mubr.bf16.mxu0 0
      %934 = vmatmul.mubr.bf16.gmra.mrb[0].mxu0 %v850
      %v935 = vpop.f32.mrb[0].mxu0
      %v936 = vadd.f32 0.0, %v935
      %v937 = vpop.f32.mrb[0].mxu0
      %v938 = vpop.f32.mrb[0].mxu0
      %v939 = vadd.f32 0.0, %v938
      %v940 = vpop.f32.mrb[0].mxu0
      %941 = vmatprep.mubr.bf16.mxu0 0
      %942 = vmatmul.mubr.bf16.gmra.mrb[0].mxu0 %v853
      %v943 = vpop.f32.mrb[0].mxu0
      %v944 = vadd.f32 0.0, %v943
      %v945 = vpop.f32.mrb[0].mxu0
      %v946 = vpop.f32.mrb[0].mxu0
      %v947 = vadd.f32 0.0, %v946
      %v948 = vpop.f32.mrb[0].mxu0
      %949 = vmatprep.mubr.bf16.mxu0 0
      %950 = vmatmul.mubr.bf16.gmra.mrb[0].mxu0 %v856
      %v951 = vpop.f32.mrb[0].mxu0
      %v952 = vadd.f32 0.0, %v951
      %v953 = vpop.f32.mrb[0].mxu0
      %v954 = vpop.f32.mrb[0].mxu0
      %v955 = vadd.f32 0.0, %v954
      %v956 = vpop.f32.mrb[0].mxu0
      %957 = vmatprep.mubr.bf16.mxu0 0
      %958 = vmatmul.mubr.bf16.gmra.mrb[0].mxu0 %v859
      %v959 = vpop.f32.mrb[0].mxu0
      %v960 = vadd.f32 0.0, %v959
      %v961 = vpop.f32.mrb[0].mxu0
      %v962 = vpop.f32.mrb[0].mxu0
      %v963 = vadd.f32 0.0, %v962
      %v964 = vpop.f32.mrb[0].mxu0
      %965 = vmatprep.mubr.bf16.mxu0 0
      %966 = vmatmul.mubr.bf16.gmra.mrb[0].mxu0 %v862
      %v967 = vpop.f32.mrb[0].mxu0
      %v968 = vadd.f32 0.0, %v967
      %v969 = vpop.f32.mrb[0].mxu0
      %v970 = vpop.f32.mrb[0].mxu0
      %v971 = vadd.f32 0.0, %v970
      %v972 = vpop.f32.mrb[0].mxu0
      %973 = vmatprep.mubr.bf16.mxu0 0
      %974 = vmatmul.mubr.bf16.gmra.mrb[0].mxu0 %v865
      %v975 = vpop.f32.mrb[0].mxu0
      %v976 = vadd.f32 0.0, %v975
      %v977 = vpop.f32.mrb[0].mxu0
      %v978 = vpop.f32.mrb[0].mxu0
      %v979 = vadd.f32 0.0, %v978
      %v980 = vpop.f32.mrb[0].mxu0
      %981 = vmatprep.mubr.bf16.mxu0 0
      %982 = vmatmul.mubr.bf16.gmra.mrb[0].mxu0 %v868
      %v983 = vpop.f32.mrb[0].mxu0
      %v984 = vadd.f32 0.0, %v983
      %v985 = vpop.f32.mrb[0].mxu0
      %v986 = vpop.f32.mrb[0].mxu0
      %v987 = vadd.f32 0.0, %v986
      %v988 = vpop.f32.mrb[0].mxu0
      %989 = vmatprep.mubr.bf16.mxu0 0
      %990 = vmatmul.mubr.bf16.gmra.mrb[0].mxu0 %v871
      %v991 = vpop.f32.mrb[0].mxu0
      %v992 = vadd.f32 0.0, %v991
      %v993 = vpop.f32.mrb[0].mxu0
      %v994 = vpop.f32.mrb[0].mxu0
      %v995 = vadd.f32 0.0, %v994
      %v996 = vpop.f32.mrb[0].mxu0
      %997 = vmatprep.mubr.bf16.mxu0 0
      %998 = vmatmul.mubr.bf16.gmra.mrb[0].mxu0 %v874
      %v999 = vpop.f32.mrb[0].mxu0
      %v1000 = vadd.f32 0.0, %v999
      %v1001 = vpop.f32.mrb[0].mxu0
      %v1002 = vpop.f32.mrb[0].mxu0
      %v1003 = vadd.f32 0.0, %v1002
      %v1004 = vpop.f32.mrb[0].mxu0
      %1005 = vmatprep.mubr.bf16.mxu0 0
      %1006 = vmatmul.mubr.bf16.gmra.mrb[0].mxu0 %v877
      %v1007 = vpop.f32.mrb[0].mxu0
      %v1008 = vadd.f32 0.0, %v1007
      %v1009 = vpop.f32.mrb[0].mxu0
      %v1010 = vpop.f32.mrb[0].mxu0
      %v1011 = vadd.f32 0.0, %v1010
      %v1012 = vpop.f32.mrb[0].mxu0
      %1013 = vmatprep.mubr.bf16.mxu0 0
      %1014 = vmatmul.mubr.bf16.gmra.mrb[0].mxu0 %v880
      %v1015 = vpop.f32.mrb[0].mxu0
      %v1016 = vadd.f32 0.0, %v1015
      %v1017 = vpop.f32.mrb[0].mxu0
      %v1018 = vpop.f32.mrb[0].mxu0
      %v1019 = vadd.f32 0.0, %v1018
      %v1020 = vpop.f32.mrb[0].mxu0
      %1021 = vmatprep.mubr.bf16.mxu0 0
      %1022 = vmatmul.mubr.bf16.gmra.mrb[0].mxu0 %v883
      %v1023 = vpop.f32.mrb[0].mxu0
      %v1024 = vadd.f32 0.0, %v1023
      %v1025 = vpop.f32.mrb[0].mxu0
      %v1026 = vpop.f32.mrb[0].mxu0
      %v1027 = vadd.f32 0.0, %v1026
      %v1028 = vpop.f32.mrb[0].mxu0
      %1029 = vmatprep.mubr.bf16.mxu0 0
      %1030 = vmatmul.mubr.bf16.gmra.mrb[0].mxu0 %v886
      %v1031 = vpop.f32.mrb[0].mxu0
      %v1032 = vadd.f32 0.0, %v1031
      %v1033 = vpop.f32.mrb[0].mxu0
      %v1034 = vpop.f32.mrb[0].mxu0
      %v1035 = vadd.f32 0.0, %v1034
      %v1036 = vpop.f32.mrb[0].mxu0
      %1037 = vmatprep.mubr.bf16.mxu0 0
      %1038 = vmatmul.mubr.bf16.gmra.mrb[0].mxu0 %v889
      %v1039 = vpop.f32.mrb[0].mxu0
      %v1040 = vadd.f32 0.0, %v1039
      %v1041 = vpop.f32.mrb[0].mxu0
      %v1042 = vpop.f32.mrb[0].mxu0
      %v1043 = vadd.f32 0.0, %v1042
      %v1044 = vpop.f32.mrb[0].mxu0
      %1045 = vmatprep.mubr.bf16.mxu0 0
      %1046 = vmatmul.mubr.bf16.gmra.mrb[0].mxu0 %v892
      %v1047 = vpop.f32.mrb[0].mxu0
      %v1048 = vadd.f32 0.0, %v1047
      %v1049 = vpop.f32.mrb[0].mxu0
      %v1050 = vpop.f32.mrb[0].mxu0
      %v1051 = vadd.f32 0.0, %v1050
      %v1052 = vpop.f32.mrb[0].mxu0
      %1053 = vmatprep.mubr.bf16.mxu0 0
      %1054 = vmatmul.mubr.bf16.gmra.mrb[0].mxu0 %v895
      %v1055 = vpop.f32.mrb[0].mxu0
      %v1056 = vadd.f32 0.0, %v1055
      %v1057 = vpop.f32.mrb[0].mxu0
      %v1058 = vpop.f32.mrb[0].mxu0
      %v1059 = vadd.f32 0.0, %v1058
      %v1060 = vpop.f32.mrb[0].mxu0
      %1061 = vdwg.mxu0
      %v1062 = vmul.f32 %v767, %v936
      %v1063 = vmul.f32 %v768, %v939
      %v1064 = vmul.f32 %v769, %v944
      %v1065 = vmul.f32 %v770, %v947
      %v1066 = vmul.f32 %v771, %v952
      %v1067 = vmul.f32 %v772, %v955
      %v1068 = vmul.f32 %v773, %v960
      %v1069 = vmul.f32 %v774, %v963
      %v1070 = vmul.f32 %v775, %v968
      %v1071 = vmul.f32 %v776, %v971
      %v1072 = vmul.f32 %v777, %v976
      %v1073 = vmul.f32 %v778, %v979
      %v1074 = vmul.f32 %v779, %v984
      %v1075 = vmul.f32 %v780, %v987
      %v1076 = vmul.f32 %v781, %v992
      %v1077 = vmul.f32 %v782, %v995
      %v1078 = vmul.f32 %v783, %v1000
      %v1079 = vmul.f32 %v784, %v1003
      %v1080 = vmul.f32 %v785, %v1008
      %v1081 = vmul.f32 %v786, %v1011
      %v1082 = vmul.f32 %v787, %v1016
      %v1083 = vmul.f32 %v788, %v1019
      %v1084 = vmul.f32 %v789, %v1024
      %v1085 = vmul.f32 %v790, %v1027
      %v1086 = vmul.f32 %v791, %v1032
      %v1087 = vmul.f32 %v792, %v1035
      %v1088 = vmul.f32 %v793, %v1040
      %v1089 = vmul.f32 %v794, %v1043
      %v1090 = vmul.f32 %v795, %v1048
      %v1091 = vmul.f32 %v796, %v1051
      %v1092 = vmul.f32 %v797, %v1056
      %v1093 = vmul.f32 %v798, %v1059
      %v1094 = vld [vmem:[%s5] sm:$0xf]
      %v1095 = vld [vmem:[%s5 + $0x4] sm:$0xf]
      %v1096 = vld [vmem:[%s5 + $0x8] sm:$0xf]
      %v1097 = vld [vmem:[%s5 + $0xc] sm:$0xf]
      %v1098 = vld [vmem:[%s5 + $0x10] sm:$0xf]
      %v1099 = vld [vmem:[%s5 + $0x14] sm:$0xf]
      %v1100 = vld [vmem:[%s5 + $0x18] sm:$0xf]
      %v1101 = vld [vmem:[%s5 + $0x1c] sm:$0xf]
      %v1102 = vpack.c.bf16 %v1063, %v1062
      %v1103 = vpack.c.bf16 %v1065, %v1064
      %v1104 = vpack.c.bf16 %v1067, %v1066
      %v1105 = vpack.c.bf16 %v1069, %v1068
      %v1106 = vpack.c.bf16 %v1071, %v1070
      %v1107 = vpack.c.bf16 %v1073, %v1072
      %v1108 = vpack.c.bf16 %v1075, %v1074
      %v1109 = vpack.c.bf16 %v1077, %v1076
      %v1110 = vpack.c.bf16 %v1079, %v1078
      %v1111 = vpack.c.bf16 %v1081, %v1080
      %v1112 = vpack.c.bf16 %v1083, %v1082
      %v1113 = vpack.c.bf16 %v1085, %v1084
      %v1114 = vpack.c.bf16 %v1087, %v1086
      %v1115 = vpack.c.bf16 %v1089, %v1088
      %v1116 = vpack.c.bf16 %v1091, %v1090
      %v1117 = vpack.c.bf16 %v1093, %v1092
      %v1126 = vunpack.c.l.b16 %v1094
      %v1127 = vunpack.c.l.b16 %v1095
      %v1128 = vunpack.c.l.b16 %v1096
      %v1129 = vunpack.c.l.b16 %v1097
      %v1130 = vunpack.c.l.b16 %v1098
      %v1131 = vunpack.c.l.b16 %v1099
      %v1132 = vunpack.c.l.b16 %v1100
      %v1133 = vunpack.c.l.b16 %v1101
      %v1134 = vpack.c.b16 %v1127, %v1126
      %v1135 = vpack.c.b16 %v1129, %v1128
      %v1136 = vpack.c.b16 %v1131, %v1130
      %v1137 = vpack.c.b16 %v1133, %v1132
      %v1143 = vsel %vm365, %v1102, 0
      %v1146 = vsel %vm365, %v1103, 0
      %v1149 = vsel %vm365, %v1104, 0
      %v1152 = vsel %vm365, %v1105, 0
      %v1155 = vsel %vm365, %v1106, 0
      %v1158 = vsel %vm365, %v1107, 0
      %v1161 = vsel %vm365, %v1108, 0
      %v1164 = vsel %vm365, %v1109, 0
      %v1167 = vsel %vm365, %v1110, 0
      %v1170 = vsel %vm365, %v1111, 0
      %v1173 = vsel %vm365, %v1112, 0
      %v1176 = vsel %vm365, %v1113, 0
      %v1179 = vsel %vm365, %v1114, 0
      %v1182 = vsel %vm365, %v1115, 0
      %v1185 = vsel %vm365, %v1116, 0
      %v1188 = vsel %vm365, %v1117, 0
      %1190 = vmatprep.subr.bf16.mxu0 0
      %1191 = vmatpush1.bf16.msra.mxu0 %v1134
      %1192 = vmatprep.subr.bf16.mxu0 0
      %1193 = vmatpush1.bf16.msra.mxu0 %v1135
      %1194 = vmatprep.subr.bf16.mxu0 0
      %1195 = vmatpush1.bf16.msra.mxu0 %v1136
      %1196 = vmatprep.subr.bf16.mxu0 0
      %1197 = vmatpush1.bf16.msra.mxu0 %v1137
      %1198 = vmatprep.subr.bf16.mxu0 0
      %1199 = vmatpush1.bf16.msra.mxu0 0
      %1200 = vmatprep.subr.bf16.mxu0 0
      %1201 = vmatpush1.bf16.msra.mxu0 0
      %1202 = vmatprep.subr.bf16.mxu0 0
      %1203 = vmatpush1.bf16.msra.mxu0 0
      %1204 = vmatprep.subr.bf16.mxu0 0
      %1205 = vmatpush1.bf16.msra.mxu0 0
      %1206 = vmatprep.subr.bf16.mxu0 0
      %1207 = vmatpush1.bf16.msra.mxu0 0
      %1208 = vmatprep.subr.bf16.mxu0 0
      %1209 = vmatpush1.bf16.msra.mxu0 0
      %1210 = vmatprep.subr.bf16.mxu0 0
      %1211 = vmatpush1.bf16.msra.mxu0 0
      %1212 = vmatprep.subr.bf16.mxu0 0
      %1213 = vmatpush1.bf16.msra.mxu0 0
      %1214 = vmatprep.subr.bf16.mxu0 0
      %1215 = vmatpush1.bf16.msra.mxu0 0
      %1216 = vmatprep.subr.bf16.mxu0 0
      %1217 = vmatpush1.bf16.msra.mxu0 0
      %1218 = vmatprep.subr.bf16.mxu0 0
      %1219 = vmatpush1.bf16.msra.mxu0 0
      %1220 = vmatprep.subr.bf16.mxu0 0
      %1221 = vmatpush1.bf16.msra.mxu0 0
      %1222 = vmatprep.mubr.bf16.mxu0 0
      %1223 = vmatmul.mubr.bf16.gmra.mrb[0].mxu0 %v1143
      %v1224 = vpop.f32.mrb[0].mxu0
      %v1225 = vadd.f32 0.0, %v1224
      %v1226 = vpop.f32.mrb[0].mxu0
      %v1227 = vpop.f32.mrb[0].mxu0
      %v1228 = vadd.f32 0.0, %v1227
      %v1229 = vpop.f32.mrb[0].mxu0
      %1230 = vmatprep.mubr.bf16.mxu0 0
      %1231 = vmatmul.mubr.bf16.gmra.mrb[0].mxu0 %v1146
      %v1232 = vpop.f32.mrb[0].mxu0
      %v1233 = vadd.f32 0.0, %v1232
      %v1234 = vpop.f32.mrb[0].mxu0
      %v1235 = vpop.f32.mrb[0].mxu0
      %v1236 = vadd.f32 0.0, %v1235
      %v1237 = vpop.f32.mrb[0].mxu0
      %1238 = vmatprep.mubr.bf16.mxu0 0
      %1239 = vmatmul.mubr.bf16.gmra.mrb[0].mxu0 %v1149
      %v1240 = vpop.f32.mrb[0].mxu0
      %v1241 = vadd.f32 0.0, %v1240
      %v1242 = vpop.f32.mrb[0].mxu0
      %v1243 = vpop.f32.mrb[0].mxu0
      %v1244 = vadd.f32 0.0, %v1243
      %v1245 = vpop.f32.mrb[0].mxu0
      %1246 = vmatprep.mubr.bf16.mxu0 0
      %1247 = vmatmul.mubr.bf16.gmra.mrb[0].mxu0 %v1152
      %v1248 = vpop.f32.mrb[0].mxu0
      %v1249 = vadd.f32 0.0, %v1248
      %v1250 = vpop.f32.mrb[0].mxu0
      %v1251 = vpop.f32.mrb[0].mxu0
      %v1252 = vadd.f32 0.0, %v1251
      %v1253 = vpop.f32.mrb[0].mxu0
      %1254 = vmatprep.mubr.bf16.mxu0 0
      %1255 = vmatmul.mubr.bf16.gmra.mrb[0].mxu0 %v1155
      %v1256 = vpop.f32.mrb[0].mxu0
      %v1257 = vadd.f32 0.0, %v1256
      %v1258 = vpop.f32.mrb[0].mxu0
      %v1259 = vpop.f32.mrb[0].mxu0
      %v1260 = vadd.f32 0.0, %v1259
      %v1261 = vpop.f32.mrb[0].mxu0
      %1262 = vmatprep.mubr.bf16.mxu0 0
      %1263 = vmatmul.mubr.bf16.gmra.mrb[0].mxu0 %v1158
      %v1264 = vpop.f32.mrb[0].mxu0
      %v1265 = vadd.f32 0.0, %v1264
      %v1266 = vpop.f32.mrb[0].mxu0
      %v1267 = vpop.f32.mrb[0].mxu0
      %v1268 = vadd.f32 0.0, %v1267
      %v1269 = vpop.f32.mrb[0].mxu0
      %1270 = vmatprep.mubr.bf16.mxu0 0
      %1271 = vmatmul.mubr.bf16.gmra.mrb[0].mxu0 %v1161
      %v1272 = vpop.f32.mrb[0].mxu0
      %v1273 = vadd.f32 0.0, %v1272
      %v1274 = vpop.f32.mrb[0].mxu0
      %v1275 = vpop.f32.mrb[0].mxu0
      %v1276 = vadd.f32 0.0, %v1275
      %v1277 = vpop.f32.mrb[0].mxu0
      %1278 = vmatprep.mubr.bf16.mxu0 0
      %1279 = vmatmul.mubr.bf16.gmra.mrb[0].mxu0 %v1164
      %v1280 = vpop.f32.mrb[0].mxu0
      %v1281 = vadd.f32 0.0, %v1280
      %v1282 = vpop.f32.mrb[0].mxu0
      %v1283 = vpop.f32.mrb[0].mxu0
      %v1284 = vadd.f32 0.0, %v1283
      %v1285 = vpop.f32.mrb[0].mxu0
      %1286 = vmatprep.mubr.bf16.mxu0 0
      %1287 = vmatmul.mubr.bf16.gmra.mrb[0].mxu0 %v1167
      %v1288 = vpop.f32.mrb[0].mxu0
      %v1289 = vadd.f32 0.0, %v1288
      %v1290 = vpop.f32.mrb[0].mxu0
      %v1291 = vpop.f32.mrb[0].mxu0
      %v1292 = vadd.f32 0.0, %v1291
      %v1293 = vpop.f32.mrb[0].mxu0
      %1294 = vmatprep.mubr.bf16.mxu0 0
      %1295 = vmatmul.mubr.bf16.gmra.mrb[0].mxu0 %v1170
      %v1296 = vpop.f32.mrb[0].mxu0
      %v1297 = vadd.f32 0.0, %v1296
      %v1298 = vpop.f32.mrb[0].mxu0
      %v1299 = vpop.f32.mrb[0].mxu0
      %v1300 = vadd.f32 0.0, %v1299
      %v1301 = vpop.f32.mrb[0].mxu0
      %1302 = vmatprep.mubr.bf16.mxu0 0
      %1303 = vmatmul.mubr.bf16.gmra.mrb[0].mxu0 %v1173
      %v1304 = vpop.f32.mrb[0].mxu0
      %v1305 = vadd.f32 0.0, %v1304
      %v1306 = vpop.f32.mrb[0].mxu0
      %v1307 = vpop.f32.mrb[0].mxu0
      %v1308 = vadd.f32 0.0, %v1307
      %v1309 = vpop.f32.mrb[0].mxu0
      %1310 = vmatprep.mubr.bf16.mxu0 0
      %1311 = vmatmul.mubr.bf16.gmra.mrb[0].mxu0 %v1176
      %v1312 = vpop.f32.mrb[0].mxu0
      %v1313 = vadd.f32 0.0, %v1312
      %v1314 = vpop.f32.mrb[0].mxu0
      %v1315 = vpop.f32.mrb[0].mxu0
      %v1316 = vadd.f32 0.0, %v1315
      %v1317 = vpop.f32.mrb[0].mxu0
      %1318 = vmatprep.mubr.bf16.mxu0 0
      %1319 = vmatmul.mubr.bf16.gmra.mrb[0].mxu0 %v1179
      %v1320 = vpop.f32.mrb[0].mxu0
      %v1321 = vadd.f32 0.0, %v1320
      %v1322 = vpop.f32.mrb[0].mxu0
      %v1323 = vpop.f32.mrb[0].mxu0
      %v1324 = vadd.f32 0.0, %v1323
      %v1325 = vpop.f32.mrb[0].mxu0
      %1326 = vmatprep.mubr.bf16.mxu0 0
      %1327 = vmatmul.mubr.bf16.gmra.mrb[0].mxu0 %v1182
      %v1328 = vpop.f32.mrb[0].mxu0
      %v1329 = vadd.f32 0.0, %v1328
      %v1330 = vpop.f32.mrb[0].mxu0
      %v1331 = vpop.f32.mrb[0].mxu0
      %v1332 = vadd.f32 0.0, %v1331
      %v1333 = vpop.f32.mrb[0].mxu0
      %1334 = vmatprep.mubr.bf16.mxu0 0
      %1335 = vmatmul.mubr.bf16.gmra.mrb[0].mxu0 %v1185
      %v1336 = vpop.f32.mrb[0].mxu0
      %v1337 = vadd.f32 0.0, %v1336
      %v1338 = vpop.f32.mrb[0].mxu0
      %v1339 = vpop.f32.mrb[0].mxu0
      %v1340 = vadd.f32 0.0, %v1339
      %v1341 = vpop.f32.mrb[0].mxu0
      %1342 = vmatprep.mubr.bf16.mxu0 0
      %1343 = vmatmul.mubr.bf16.gmra.mrb[0].mxu0 %v1188
      %v1344 = vpop.f32.mrb[0].mxu0
      %v1345 = vadd.f32 0.0, %v1344
      %v1346 = vpop.f32.mrb[0].mxu0
      %v1347 = vpop.f32.mrb[0].mxu0
      %v1348 = vadd.f32 0.0, %v1347
      %v1349 = vpop.f32.mrb[0].mxu0
      %1350 = vdwg.mxu0
      %v1351 = vxor.u32 %v1225, 2147483648
      %v1352 = vxor.u32 %v1228, 2147483648
      %v1353 = vxor.u32 %v1233, 2147483648
      %v1354 = vxor.u32 %v1236, 2147483648
      %v1355 = vxor.u32 %v1241, 2147483648
      %v1356 = vxor.u32 %v1244, 2147483648
      %v1357 = vxor.u32 %v1249, 2147483648
      %v1358 = vxor.u32 %v1252, 2147483648
      %v1359 = vxor.u32 %v1257, 2147483648
      %v1360 = vxor.u32 %v1260, 2147483648
      %v1361 = vxor.u32 %v1265, 2147483648
      %v1362 = vxor.u32 %v1268, 2147483648
      %v1363 = vxor.u32 %v1273, 2147483648
      %v1364 = vxor.u32 %v1276, 2147483648
      %v1365 = vxor.u32 %v1281, 2147483648
      %v1366 = vxor.u32 %v1284, 2147483648
      %v1367 = vxor.u32 %v1289, 2147483648
      %v1368 = vxor.u32 %v1292, 2147483648
      %v1369 = vxor.u32 %v1297, 2147483648
      %v1370 = vxor.u32 %v1300, 2147483648
      %v1371 = vxor.u32 %v1305, 2147483648
      %v1372 = vxor.u32 %v1308, 2147483648
      %v1373 = vxor.u32 %v1313, 2147483648
      %v1374 = vxor.u32 %v1316, 2147483648
      %v1375 = vxor.u32 %v1321, 2147483648
      %v1376 = vxor.u32 %v1324, 2147483648
      %v1377 = vxor.u32 %v1329, 2147483648
      %v1378 = vxor.u32 %v1332, 2147483648
      %v1379 = vxor.u32 %v1337, 2147483648
      %v1380 = vxor.u32 %v1340, 2147483648
      %v1381 = vxor.u32 %v1345, 2147483648
      %v1382 = vxor.u32 %v1348, 2147483648
      %v1383 = vmul.f32 %v1351, 1.442695
      %v1384 = vpow.pop %v1383
      %v1385 = vmul.f32 %v1352, 1.442695
      %v1386 = vpow.pop %v1385
      %v1387 = vmul.f32 %v1353, 1.442695
      %v1388 = vpow.pop %v1387
      %v1389 = vmul.f32 %v1354, 1.442695
      %v1390 = vpow.pop %v1389
      %v1391 = vmul.f32 %v1355, 1.442695
      %v1392 = vpow.pop %v1391
      %v1393 = vmul.f32 %v1356, 1.442695
      %v1394 = vpow.pop %v1393
      %v1395 = vmul.f32 %v1357, 1.442695
      %v1396 = vpow.pop %v1395
      %v1397 = vmul.f32 %v1358, 1.442695
      %v1398 = vpow.pop %v1397
      %v1399 = vmul.f32 %v1359, 1.442695
      %v1400 = vpow.pop %v1399
      %v1401 = vmul.f32 %v1360, 1.442695
      %v1402 = vpow.pop %v1401
      %v1403 = vmul.f32 %v1361, 1.442695
      %v1404 = vpow.pop %v1403
      %v1405 = vmul.f32 %v1362, 1.442695
      %v1406 = vpow.pop %v1405
      %v1407 = vmul.f32 %v1363, 1.442695
      %v1408 = vpow.pop %v1407
      %v1409 = vmul.f32 %v1364, 1.442695
      %v1410 = vpow.pop %v1409
      %v1411 = vmul.f32 %v1365, 1.442695
      %v1412 = vpow.pop %v1411
      %v1413 = vmul.f32 %v1366, 1.442695
      %v1414 = vpow.pop %v1413
      %v1415 = vmul.f32 %v1367, 1.442695
      %v1416 = vpow.pop %v1415
      %v1417 = vmul.f32 %v1368, 1.442695
      %v1418 = vpow.pop %v1417
      %v1419 = vmul.f32 %v1369, 1.442695
      %v1420 = vpow.pop %v1419
      %v1421 = vmul.f32 %v1370, 1.442695
      %v1422 = vpow.pop %v1421
      %v1423 = vmul.f32 %v1371, 1.442695
      %v1424 = vpow.pop %v1423
      %v1425 = vmul.f32 %v1372, 1.442695
      %v1426 = vpow.pop %v1425
      %v1427 = vmul.f32 %v1373, 1.442695
      %v1428 = vpow.pop %v1427
      %v1429 = vmul.f32 %v1374, 1.442695
      %v1430 = vpow.pop %v1429
      %v1431 = vmul.f32 %v1375, 1.442695
      %v1432 = vpow.pop %v1431
      %v1433 = vmul.f32 %v1376, 1.442695
      %v1434 = vpow.pop %v1433
      %v1435 = vmul.f32 %v1377, 1.442695
      %v1436 = vpow.pop %v1435
      %v1437 = vmul.f32 %v1378, 1.442695
      %v1438 = vpow.pop %v1437
      %v1439 = vmul.f32 %v1379, 1.442695
      %v1440 = vpow.pop %v1439
      %v1441 = vmul.f32 %v1380, 1.442695
      %v1442 = vpow.pop %v1441
      %v1443 = vmul.f32 %v1381, 1.442695
      %v1444 = vpow.pop %v1443
      %v1445 = vmul.f32 %v1382, 1.442695
      %v1446 = vpow.pop %v1445
      %v1447 = vadd.f32 %v1384, 1.0
      %v1448 = vadd.f32 %v1386, 1.0
      %v1449 = vadd.f32 %v1388, 1.0
      %v1450 = vadd.f32 %v1390, 1.0
      %v1451 = vadd.f32 %v1392, 1.0
      %v1452 = vadd.f32 %v1394, 1.0
      %v1453 = vadd.f32 %v1396, 1.0
      %v1454 = vadd.f32 %v1398, 1.0
      %v1455 = vadd.f32 %v1400, 1.0
      %v1456 = vadd.f32 %v1402, 1.0
      %v1457 = vadd.f32 %v1404, 1.0
      %v1458 = vadd.f32 %v1406, 1.0
      %v1459 = vadd.f32 %v1408, 1.0
      %v1460 = vadd.f32 %v1410, 1.0
      %v1461 = vadd.f32 %v1412, 1.0
      %v1462 = vadd.f32 %v1414, 1.0
      %v1463 = vadd.f32 %v1416, 1.0
      %v1464 = vadd.f32 %v1418, 1.0
      %v1465 = vadd.f32 %v1420, 1.0
      %v1466 = vadd.f32 %v1422, 1.0
      %v1467 = vadd.f32 %v1424, 1.0
      %v1468 = vadd.f32 %v1426, 1.0
      %v1469 = vadd.f32 %v1428, 1.0
      %v1470 = vadd.f32 %v1430, 1.0
      %v1471 = vadd.f32 %v1432, 1.0
      %v1472 = vadd.f32 %v1434, 1.0
      %v1473 = vadd.f32 %v1436, 1.0
      %v1474 = vadd.f32 %v1438, 1.0
      %v1475 = vadd.f32 %v1440, 1.0
      %v1476 = vadd.f32 %v1442, 1.0
      %v1477 = vadd.f32 %v1444, 1.0
      %v1478 = vadd.f32 %v1446, 1.0
      %v1479 = vrcp.pop %v1447
      %v1480 = vmul.f32 1.0, %v1479
      %v1481 = vrcp.pop %v1448
      %v1482 = vmul.f32 1.0, %v1481
      %v1483 = vrcp.pop %v1449
      %v1484 = vmul.f32 1.0, %v1483
      %v1485 = vrcp.pop %v1450
      %v1486 = vmul.f32 1.0, %v1485
      %v1487 = vrcp.pop %v1451
      %v1488 = vmul.f32 1.0, %v1487
      %v1489 = vrcp.pop %v1452
      %v1490 = vmul.f32 1.0, %v1489
      %v1491 = vrcp.pop %v1453
      %v1492 = vmul.f32 1.0, %v1491
      %v1493 = vrcp.pop %v1454
      %v1494 = vmul.f32 1.0, %v1493
      %v1495 = vrcp.pop %v1455
      %v1496 = vmul.f32 1.0, %v1495
      %v1497 = vrcp.pop %v1456
      %v1498 = vmul.f32 1.0, %v1497
      %v1499 = vrcp.pop %v1457
      %v1500 = vmul.f32 1.0, %v1499
      %v1501 = vrcp.pop %v1458
      %v1502 = vmul.f32 1.0, %v1501
      %v1503 = vrcp.pop %v1459
      %v1504 = vmul.f32 1.0, %v1503
      %v1505 = vrcp.pop %v1460
      %v1506 = vmul.f32 1.0, %v1505
      %v1507 = vrcp.pop %v1461
      %v1508 = vmul.f32 1.0, %v1507
      %v1509 = vrcp.pop %v1462
      %v1510 = vmul.f32 1.0, %v1509
      %v1511 = vrcp.pop %v1463
      %v1512 = vmul.f32 1.0, %v1511
      %v1513 = vrcp.pop %v1464
      %v1514 = vmul.f32 1.0, %v1513
      %v1515 = vrcp.pop %v1465
      %v1516 = vmul.f32 1.0, %v1515
      %v1517 = vrcp.pop %v1466
      %v1518 = vmul.f32 1.0, %v1517
      %v1519 = vrcp.pop %v1467
      %v1520 = vmul.f32 1.0, %v1519
      %v1521 = vrcp.pop %v1468
      %v1522 = vmul.f32 1.0, %v1521
      %v1523 = vrcp.pop %v1469
      %v1524 = vmul.f32 1.0, %v1523
      %v1525 = vrcp.pop %v1470
      %v1526 = vmul.f32 1.0, %v1525
      %v1527 = vrcp.pop %v1471
      %v1528 = vmul.f32 1.0, %v1527
      %v1529 = vrcp.pop %v1472
      %v1530 = vmul.f32 1.0, %v1529
      %v1531 = vrcp.pop %v1473
      %v1532 = vmul.f32 1.0, %v1531
      %v1533 = vrcp.pop %v1474
      %v1534 = vmul.f32 1.0, %v1533
      %v1535 = vrcp.pop %v1475
      %v1536 = vmul.f32 1.0, %v1535
      %v1537 = vrcp.pop %v1476
      %v1538 = vmul.f32 1.0, %v1537
      %v1539 = vrcp.pop %v1477
      %v1540 = vmul.f32 1.0, %v1539
      %v1541 = vrcp.pop %v1478
      %v1542 = vmul.f32 1.0, %v1541
      %v1543 = vmul.f32 %v1225, %v1480
      %v1544 = vmul.f32 %v1228, %v1482
      %v1545 = vmul.f32 %v1233, %v1484
      %v1546 = vmul.f32 %v1236, %v1486
      %v1547 = vmul.f32 %v1241, %v1488
      %v1548 = vmul.f32 %v1244, %v1490
      %v1549 = vmul.f32 %v1249, %v1492
      %v1550 = vmul.f32 %v1252, %v1494
      %v1551 = vmul.f32 %v1257, %v1496
      %v1552 = vmul.f32 %v1260, %v1498
      %v1553 = vmul.f32 %v1265, %v1500
      %v1554 = vmul.f32 %v1268, %v1502
      %v1555 = vmul.f32 %v1273, %v1504
      %v1556 = vmul.f32 %v1276, %v1506
      %v1557 = vmul.f32 %v1281, %v1508
      %v1558 = vmul.f32 %v1284, %v1510
      %v1559 = vmul.f32 %v1289, %v1512
      %v1560 = vmul.f32 %v1292, %v1514
      %v1561 = vmul.f32 %v1297, %v1516
      %v1562 = vmul.f32 %v1300, %v1518
      %v1563 = vmul.f32 %v1305, %v1520
      %v1564 = vmul.f32 %v1308, %v1522
      %v1565 = vmul.f32 %v1313, %v1524
      %v1566 = vmul.f32 %v1316, %v1526
      %v1567 = vmul.f32 %v1321, %v1528
      %v1568 = vmul.f32 %v1324, %v1530
      %v1569 = vmul.f32 %v1329, %v1532
      %v1570 = vmul.f32 %v1332, %v1534
      %v1571 = vmul.f32 %v1337, %v1536
      %v1572 = vmul.f32 %v1340, %v1538
      %v1573 = vmul.f32 %v1345, %v1540
      %v1574 = vmul.f32 %v1348, %v1542
      %v1575 = vpack.c.bf16 %v1544, %v1543
      %v1576 = vpack.c.bf16 %v1546, %v1545
      %v1577 = vpack.c.bf16 %v1548, %v1547
      %v1578 = vpack.c.bf16 %v1550, %v1549
      %v1579 = vpack.c.bf16 %v1552, %v1551
      %v1580 = vpack.c.bf16 %v1554, %v1553
      %v1581 = vpack.c.bf16 %v1556, %v1555
      %v1582 = vpack.c.bf16 %v1558, %v1557
      %v1583 = vpack.c.bf16 %v1560, %v1559
      %v1584 = vpack.c.bf16 %v1562, %v1561
      %v1585 = vpack.c.bf16 %v1564, %v1563
      %v1586 = vpack.c.bf16 %v1566, %v1565
      %v1587 = vpack.c.bf16 %v1568, %v1567
      %v1588 = vpack.c.bf16 %v1570, %v1569
      %v1589 = vpack.c.bf16 %v1572, %v1571
      %v1590 = vpack.c.bf16 %v1574, %v1573
      %v1607 = vunpack.c.l.b16 %v1575
      %v1608 = vunpack.c.h.b16 %v1575
      %v1609 = vunpack.c.l.b16 %v1576
      %v1610 = vunpack.c.h.b16 %v1576
      %v1611 = vunpack.c.l.b16 %v1577
      %v1612 = vunpack.c.h.b16 %v1577
      %v1613 = vunpack.c.l.b16 %v1578
      %v1614 = vunpack.c.h.b16 %v1578
      %v1615 = vunpack.c.l.b16 %v1579
      %v1616 = vunpack.c.h.b16 %v1579
      %v1617 = vunpack.c.l.b16 %v1580
      %v1618 = vunpack.c.h.b16 %v1580
      %v1619 = vunpack.c.l.b16 %v1581
      %v1620 = vunpack.c.h.b16 %v1581
      %v1621 = vunpack.c.l.b16 %v1582
      %v1622 = vunpack.c.h.b16 %v1582
      %v1623 = vunpack.c.l.b16 %v1583
      %v1624 = vunpack.c.h.b16 %v1583
      %v1625 = vunpack.c.l.b16 %v1584
      %v1626 = vunpack.c.h.b16 %v1584
      %v1627 = vunpack.c.l.b16 %v1585
      %v1628 = vunpack.c.h.b16 %v1585
      %v1629 = vunpack.c.l.b16 %v1586
      %v1630 = vunpack.c.h.b16 %v1586
      %v1631 = vunpack.c.l.b16 %v1587
      %v1632 = vunpack.c.h.b16 %v1587
      %v1633 = vunpack.c.l.b16 %v1588
      %v1634 = vunpack.c.h.b16 %v1588
      %v1635 = vunpack.c.l.b16 %v1589
      %v1636 = vunpack.c.h.b16 %v1589
      %v1637 = vunpack.c.l.b16 %v1590
      %v1638 = vunpack.c.h.b16 %v1590
      %v1639 = vpack.c.b16 %v1607, %v1607
      %v1640 = vpack.c.b16 %v1608, %v1608
      %v1641 = vpack.c.b16 %v1609, %v1609
      %v1642 = vpack.c.b16 %v1610, %v1610
      %v1643 = vpack.c.b16 %v1611, %v1611
      %v1644 = vpack.c.b16 %v1612, %v1612
      %v1645 = vpack.c.b16 %v1613, %v1613
      %v1646 = vpack.c.b16 %v1614, %v1614
      %v1647 = vpack.c.b16 %v1615, %v1615
      %v1648 = vpack.c.b16 %v1616, %v1616
      %v1649 = vpack.c.b16 %v1617, %v1617
      %v1650 = vpack.c.b16 %v1618, %v1618
      %v1651 = vpack.c.b16 %v1619, %v1619
      %v1652 = vpack.c.b16 %v1620, %v1620
      %v1653 = vpack.c.b16 %v1621, %v1621
      %v1654 = vpack.c.b16 %v1622, %v1622
      %v1655 = vpack.c.b16 %v1623, %v1623
      %v1656 = vpack.c.b16 %v1624, %v1624
      %v1657 = vpack.c.b16 %v1625, %v1625
      %v1658 = vpack.c.b16 %v1626, %v1626
      %v1659 = vpack.c.b16 %v1627, %v1627
      %v1660 = vpack.c.b16 %v1628, %v1628
      %v1661 = vpack.c.b16 %v1629, %v1629
      %v1662 = vpack.c.b16 %v1630, %v1630
      %v1663 = vpack.c.b16 %v1631, %v1631
      %v1664 = vpack.c.b16 %v1632, %v1632
      %v1665 = vpack.c.b16 %v1633, %v1633
      %v1666 = vpack.c.b16 %v1634, %v1634
      %v1667 = vpack.c.b16 %v1635, %v1635
      %v1668 = vpack.c.b16 %v1636, %v1636
      %v1669 = vpack.c.b16 %v1637, %v1637
      %v1670 = vpack.c.b16 %v1638, %v1638
      %vm1703 = vcmask 257024
      %1704 = vst.msk [vmem:[%s275] sm:$0xf] %vm1703, %v1639
      %1705 = vst.msk [vmem:[%s275 + $0x4] sm:$0xf] %vm1703, %v1640
      %1706 = vst.msk [vmem:[%s275 + $0x8] sm:$0xf] %vm1703, %v1641
      %1707 = vst.msk [vmem:[%s275 + $0xc] sm:$0xf] %vm1703, %v1642
      %1708 = vst.msk [vmem:[%s275 + $0x10] sm:$0xf] %vm1703, %v1643
      %1709 = vst.msk [vmem:[%s275 + $0x14] sm:$0xf] %vm1703, %v1644
      %1710 = vst.msk [vmem:[%s275 + $0x18] sm:$0xf] %vm1703, %v1645
      %1711 = vst.msk [vmem:[%s275 + $0x1c] sm:$0xf] %vm1703, %v1646
      %1712 = vst.msk [vmem:[%s275 + $0x20] sm:$0xf] %vm1703, %v1647
      %1713 = vst.msk [vmem:[%s275 + $0x24] sm:$0xf] %vm1703, %v1648
      %1714 = vst.msk [vmem:[%s275 + $0x28] sm:$0xf] %vm1703, %v1649
      %1715 = vst.msk [vmem:[%s275 + $0x2c] sm:$0xf] %vm1703, %v1650
      %1716 = vst.msk [vmem:[%s275 + $0x30] sm:$0xf] %vm1703, %v1651
      %1717 = vst.msk [vmem:[%s275 + $0x34] sm:$0xf] %vm1703, %v1652
      %1718 = vst.msk [vmem:[%s275 + $0x38] sm:$0xf] %vm1703, %v1653
      %1719 = vst.msk [vmem:[%s275 + $0x3c] sm:$0xf] %vm1703, %v1654
      %1720 = vst.msk [vmem:[%s275 + $0x40] sm:$0xf] %vm1703, %v1655
      %1721 = vst.msk [vmem:[%s275 + $0x44] sm:$0xf] %vm1703, %v1656
      %1722 = vst.msk [vmem:[%s275 + $0x48] sm:$0xf] %vm1703, %v1657
      %1723 = vst.msk [vmem:[%s275 + $0x4c] sm:$0xf] %vm1703, %v1658
      %1724 = vst.msk [vmem:[%s275 + $0x50] sm:$0xf] %vm1703, %v1659
      %1725 = vst.msk [vmem:[%s275 + $0x54] sm:$0xf] %vm1703, %v1660
      %1726 = vst.msk [vmem:[%s275 + $0x58] sm:$0xf] %vm1703, %v1661
      %1727 = vst.msk [vmem:[%s275 + $0x5c] sm:$0xf] %vm1703, %v1662
      %1728 = vst.msk [vmem:[%s275 + $0x60] sm:$0xf] %vm1703, %v1663
      %1729 = vst.msk [vmem:[%s275 + $0x64] sm:$0xf] %vm1703, %v1664
      %1730 = vst.msk [vmem:[%s275 + $0x68] sm:$0xf] %vm1703, %v1665
      %1731 = vst.msk [vmem:[%s275 + $0x6c] sm:$0xf] %vm1703, %v1666
      %1732 = vst.msk [vmem:[%s275 + $0x70] sm:$0xf] %vm1703, %v1667
      %1733 = vst.msk [vmem:[%s275 + $0x74] sm:$0xf] %vm1703, %v1668
      %1734 = vst.msk [vmem:[%s275 + $0x78] sm:$0xf] %vm1703, %v1669
      %1735 = vst.msk [vmem:[%s275 + $0x7c] sm:$0xf] %vm1703, %v1670
      %s1736 = smul.u32 32, %s17
      %p1737 = scmp.lt.s32.totalorder %s1736, 63
      %s1738 = scalar_select %p1737, %s1736, 63
      %s1739 = smul.addr %s1738, 4
      %s1740 = scalar_lea.vmem %s6, %s1739
      // Predicated region
      $region45: #{tpu_custom_call.1} parent=43 // pred_check
        %p1741 = pneg %p171
      $region46: #{tpu_custom_call.1} parent=43 // pred_check_branch
        %1743 = sbr.rel (%p1741) target = $region48
      $region47: #{tpu_custom_call.1} parent=43 // pred_region
        %s1744 = smul.u32 32, %s17
      $region48: #{tpu_custom_call.1} parent=43 // pred_fallthru
        _
    $region44: #{tpu_custom_call.1} parent=5 // pred_fallthru
      _
    %p1745 = scmp.le.s32.totalorder 2, %s12
    // Predicated region
    $region49: #{tpu_custom_call.1} parent=5 // pred_check
      %p1746 = pneg %p1745
    $region50: #{tpu_custom_call.1} parent=5 // pred_check_branch
      %1748 = sbr.rel (%p1746) target = $region52
    $region51: #{tpu_custom_call.1} parent=5 // pred_region
      %s1749 = ssub.s32 %s12, 2
      // Predicated region
      $region53: #{tpu_custom_call.1} parent=51 // pred_check
        %p1750 = pneg %p177
      $region54: #{tpu_custom_call.1} parent=51 // pred_check_branch
        %1752 = sbr.rel (%p1750) target = $region56
      $region55: #{tpu_custom_call.1} parent=51 // pred_region
        %s1753 = smul.u32 32, %s18
        %p1754 = scmp.lt.s32.totalorder %s1753, 63
        %s1755 = scalar_select %p1754, %s1753, 63
        %s1756 = smul.addr %s1755, 4
        %s1757 = scalar_lea.vmem %s6, %s1756
      $region56: #{tpu_custom_call.1} parent=51 // pred_fallthru
        _
    $region52: #{tpu_custom_call.1} parent=5 // pred_fallthru
      _
  $region6: #{tpu_custom_call.1} parent=0 // loop_footer
    %s16 = sadd.s32 1, %s12
  $region7: #{tpu_custom_call.1} parent=0 // loop_footer_branch
    %11 = sbr.rel target = $region3
  $region8: #{tpu_custom_call.1} parent=0 // loop_exit
    _

</llo_original>
